<compile_context>
chip_gen: v6e
topology: v6e:2x2x1
jax: 0.10.0
libtpu: 0.0.40
codegen_flags: <defaults>
</compile_context>

<pallas_src>
import functools
import math

import numpy as np
import jax
import jax.numpy as jnp
from jax.experimental import pallas as pl
from jax.experimental.pallas import tpu as pltpu

EPS = 1e-6
MAX_LEN = 1000


def _rmsnorm(v, w):
    ms = jnp.mean(v * v, axis=-1, keepdims=True)
    return v * jax.lax.rsqrt(ms + EPS) * w


def encoder_block_kernel(x_ref, bias_ref, cos_ref, sin_ref,
                         rms1_ref, wq_ref, bq_ref, wqr_ref, bqr_ref,
                         wk_ref, bk_ref, wkr_ref, bkr_ref,
                         wv_ref, bv_ref, wo_ref, bo_ref,
                         rms2_ref, w1_ref, b1_ref, w2_ref, b2_ref,
                         out_ref, *, heads):
    x = x_ref[0]                  # (S, D) f32
    mask_bias = bias_ref[0]       # (1, S) f32 additive: 0 valid, -1e9 padded key
    cos_d = cos_ref[...]          # (S, D) f32, per-head [cos | cos] blocks
    sin_d = sin_ref[...]          # (S, D) f32

    S, D = x.shape
    hd = D // heads
    scale = 1.0 / math.sqrt(hd)

    # ---- pre-attention RMSNorm (f32 VPU) + projections (bf16 MXU, f32 accumulate) ----
    xn = _rmsnorm(x, rms1_ref[...]).astype(jnp.bfloat16)

    def proj(w_ref, b_ref):
        return jnp.dot(xn, w_ref[...], preferred_element_type=jnp.float32) + b_ref[...]

    q = proj(wq_ref, bq_ref)           # (S, D) f32
    qp = proj(wqr_ref, bqr_ref)        # rotate-half partner (pre-permuted/negated Wq)
    k = proj(wk_ref, bk_ref)
    kp = proj(wkr_ref, bkr_ref)
    v_b = proj(wv_ref, bv_ref).astype(jnp.bfloat16)

    # ---- full-width RoPE: one VPU pass covering every head, no per-head slicing ----
    q_rot = (q * cos_d + qp * sin_d).astype(jnp.bfloat16)
    k_rot = (k * cos_d + kp * sin_d).astype(jnp.bfloat16)

    # ---- per-head softmax attention (scores / mask / softmax kept in f32) ----
    # TODO(synk): for long S, add a query-tile grid axis + flash-style K/V streaming and
    # pack two hd=64 heads per MXU contraction; at these shapes (S,S) per head is tiny.
    ctx = []
    for h in range(heads):
        lo = h * hd
        qh = q_rot[:, lo:lo + hd]
        kh = k_rot[:, lo:lo + hd]
        # TODO(synk): stream K pre-transposed (D, S) to drop the per-head K^T relayout.
        scores = jax.lax.dot_general(qh, kh, (((1,), (1,)), ((), ())),
                                     preferred_element_type=jnp.float32) * scale
        scores = scores + mask_bias                         # (S, S) + (1, S), f32
        m = jnp.max(scores, axis=-1, keepdims=True)
        p = jnp.exp(scores - m)
        inv = pl.reciprocal(jnp.sum(p, axis=-1, keepdims=True), approx=True)  # EUP
        p = (p * inv).astype(jnp.bfloat16)
        ctx.append(jnp.dot(p, v_b[:, lo:lo + hd], preferred_element_type=jnp.float32))
    # single lane-dense (S, D) value feeding the output projection (no scratch stores).
    attn_ctx = jnp.concatenate(ctx, axis=-1).astype(jnp.bfloat16)

    attn = jnp.dot(attn_ctx, wo_ref[...],
                   preferred_element_type=jnp.float32) + bo_ref[...]
    h_res = x + attn                                        # residual 1 (f32)

    # ---- pre-FFN RMSNorm + FFN ----
    # TODO(synk): for D >= 1024 on v7x (64 MiB VMEM), tile the dff=4D axis over a grid
    # dimension and single-buffer the grid-invariant weight blocks (pl.Buffered(1)).
    hn = _rmsnorm(h_res, rms2_ref[...]).astype(jnp.bfloat16)
    f = jnp.dot(hn, w1_ref[...], preferred_element_type=jnp.float32) + b1_ref[...]
    f = jax.nn.gelu(f).astype(jnp.bfloat16)                 # tanh approx (EUP-friendly)
    f = jnp.dot(f, w2_ref[...], preferred_element_type=jnp.float32) + b2_ref[...]
    out_ref[0] = h_res + f                                  # residual 2 (f32)


def encoder_block(x, mask_bias3, cos_d, sin_d, p, heads):
    B, S, D = x.shape
    dff = p["w1"].shape[1]
    names = ("rms1", "wq", "bq", "wqr", "bqr", "wk", "bk", "wkr", "bkr",
             "wv", "bv", "wo", "bo", "rms2", "w1", "b1", "w2", "b2")
    weights = [p[n] for n in names]

    def full_spec(a):
        nd = a.ndim
        return pl.BlockSpec(a.shape, lambda b, _nd=nd: (0,) * _nd)

    in_specs = ([pl.BlockSpec((1, S, D), lambda b: (b, 0, 0)),
                 pl.BlockSpec((1, 1, S), lambda b: (b, 0, 0)),
                 full_spec(cos_d), full_spec(sin_d)]
                + [full_spec(w) for w in weights])

    # Advisory cost estimate (projections + attention + FFN) for the XLA scheduler.
    flops = B * (2 * S * D * D * 6 + 4 * S * D * dff + 4 * S * S * D)
    transcendentals = B * (heads * S * S + S * dff + heads * S + 2 * S)
    bytes_accessed = (2 * B * S * D * 4 + B * S * 4 + 2 * S * D * 4
                      + (6 * D * D + 2 * D * dff) * 2      # bf16 weights
                      + (8 * D + dff) * 4)                  # f32 biases / rms weights

    kernel = functools.partial(encoder_block_kernel, heads=heads)
    return pl.pallas_call(
        kernel,
        out_shape=jax.ShapeDtypeStruct((B, S, D), jnp.float32),
        grid_spec=pltpu.PrefetchScalarGridSpec(
            num_scalar_prefetch=0,
            grid=(B,),
            in_specs=in_specs,
            out_specs=pl.BlockSpec((1, S, D), lambda b: (b, 0, 0))),
        compiler_params=pltpu.CompilerParams(
            dimension_semantics=("parallel",),
            vmem_limit_bytes=32 * 1024 * 1024),
        input_output_aliases={0: 0},      # residual output overwrites x in HBM
        cost_estimate=pl.CostEstimate(flops=int(flops),
                                      transcendentals=int(transcendentals),
                                      bytes_accessed=int(bytes_accessed)),
    )(x, mask_bias3, cos_d, sin_d, *weights)


def precomputed_theta_pos_frequencies(head_dim, max_len, theta=10000.0):
    inv = 1.0 / (theta ** (jnp.arange(0, head_dim, 2, dtype=jnp.float32) / head_dim))
    pos = jnp.arange(max_len, dtype=jnp.float32)
    ang = jnp.outer(pos, inv)                        # (max_len, head_dim//2)
    return jnp.cos(ang), jnp.sin(ang)


def init_params(key, dim, heads, num_layers, ffn_mult=4):
    hd = dim // heads
    hd2 = hd // 2
    dff = ffn_mult * dim

    # per-head permutation: torch interleaved RoPE pairs (re at 2i, im at 2i+1)
    # -> contiguous [re-half | im-half] per head so the kernel uses rotate-half.
    perm = np.concatenate([np.arange(0, hd, 2), np.arange(1, hd, 2)])
    full_perm = jnp.asarray(np.concatenate([h * hd + perm for h in range(heads)]))

    # rotate-half partner: within each head block, partner = [-im_half | re_half].
    rot_idx = np.empty(dim, dtype=np.int64)
    rot_sgn = np.empty((1, dim), dtype=np.float32)
    for h in range(heads):
        lo = h * hd
        rot_idx[lo:lo + hd2] = np.arange(lo + hd2, lo + hd)
        rot_idx[lo + hd2:lo + hd] = np.arange(lo, lo + hd2)
        rot_sgn[0, lo:lo + hd2] = -1.0
        rot_sgn[0, lo + hd2:lo + hd] = 1.0
    rot_idx = jnp.asarray(rot_idx)
    rot_sgn = jnp.asarray(rot_sgn)

    def lin(k, fan_in, fan_out):
        lim = 1.0 / math.sqrt(fan_in)
        return jax.random.uniform(k, (fan_in, fan_out), jnp.float32, -lim, lim)

    def bias(k, n, fan_in):
        lim = 1.0 / math.sqrt(fan_in)
        return jax.random.uniform(k, (1, n), jnp.float32, -lim, lim)

    bf16 = lambda a: a.astype(jnp.bfloat16)

    params = []
    for _ in range(num_layers):
        keys = jax.random.split(key, 13)
        key = keys[0]
        wq, bq = lin(keys[1], dim, dim), bias(keys[2], dim, dim)
        wk, bk = lin(keys[3], dim, dim), bias(keys[4], dim, dim)
        wv, bv = lin(keys[5], dim, dim), bias(keys[6], dim, dim)
        wo, bo = lin(keys[7], dim, dim), bias(keys[8], dim, dim)
        w1, b1 = lin(keys[9], dim, dff), bias(keys[10], dff, dim)
        w2, b2 = lin(keys[11], dff, dim), bias(keys[12], dim, dff)
        # fold the RoPE-pair interleaving into the q/k projections.
        wq, bq = wq[:, full_perm], bq[:, full_perm]
        wk, bk = wk[:, full_perm], bk[:, full_perm]
        # second pre-permuted / pre-negated copies: xn @ wqr + bqr == rotate_half(q),
        # letting the kernel apply RoPE at full (S, D) width with zero per-head slicing.
        wqr, bqr = wq[:, rot_idx] * rot_sgn, bq[:, rot_idx] * rot_sgn
        wkr, bkr = wk[:, rot_idx] * rot_sgn, bk[:, rot_idx] * rot_sgn
        params.append(dict(
            rms1=jnp.ones((1, dim), jnp.float32),
            wq=bf16(wq), bq=bq, wqr=bf16(wqr), bqr=bqr,
            wk=bf16(wk), bk=bk, wkr=bf16(wkr), bkr=bkr,
            wv=bf16(wv), bv=bv, wo=bf16(wo), bo=bo,
            rms2=jnp.ones((1, dim), jnp.float32),
            w1=bf16(w1), b1=b1, w2=bf16(w2), b2=b2))
    return params


def t5_encoder(e_x, e_key_padding_mask, params, heads):
    B, S, D = e_x.shape
    hd = D // heads
    cos_full, sin_full = precomputed_theta_pos_frequencies(hd, MAX_LEN)
    cos, sin = cos_full[:S], sin_full[:S]                   # (S, hd//2)
    # expand to (S, D): every head uses the same angles -> per-head block [cos | cos].
    cos_d = jnp.tile(jnp.concatenate([cos, cos], axis=1), (1, heads))
    sin_d = jnp.tile(jnp.concatenate([sin, sin], axis=1), (1, heads))
    # key_padding_mask: 1.0 => padded key (ignored), 0.0 => valid.  Kept in f32 so the
    # -1e9 bias / exp underflow semantics are unchanged by the bf16 MXU path.
    mask_bias = (e_key_padding_mask.astype(jnp.float32) * (-1e9)).reshape(B, 1, S)
    # TODO(synk): cross-pallas_call prefetch (P10) of the next layer's weights to hide
    # the per-layer weight DMA on v7x / v5e.
    for p in params:
        e_x = encoder_block(e_x, mask_bias, cos_d, sin_d, p, heads)
    return e_x


if __name__ == "__main__":
    B, S, D, H, L = 2, 8, 32, 4, 2          # batch, seq, dim, heads, layers
    key = jax.random.PRNGKey(0)
    kx, kp = jax.random.split(key, 2)
    x = jax.random.normal(kx, (B, S, D), jnp.float32)
    # batch 0: no padding; batch 1: last two positions padded.
    mask = (jnp.arange(S)[None, :] >= jnp.array([[S], [S - 2]])).astype(jnp.float32)

    params = init_params(kp, D, H, L)
    out = t5_encoder(x, mask, params, H)
    out = jax.block_until_ready(out)

    assert out.shape == (B, S, D)
    assert bool(jnp.all(jnp.isfinite(out)))
    print("KERNEL_OK")
</pallas_src>

<mosaic_0001>
module attributes {stable_mosaic.version = 11 : i64} {
  func.func @encoder_block_kernel(%arg0: i32, %arg1: memref<1x8x32xf32, #tpu.memory_space<vmem>>, %arg2: memref<1x1x8xf32, #tpu.memory_space<vmem>>, %arg3: memref<8x32xf32, #tpu.memory_space<vmem>>, %arg4: memref<8x32xf32, #tpu.memory_space<vmem>>, %arg5: memref<1x32xf32, #tpu.memory_space<vmem>>, %arg6: memref<32x32xbf16, #tpu.memory_space<vmem>>, %arg7: memref<1x32xf32, #tpu.memory_space<vmem>>, %arg8: memref<32x32xbf16, #tpu.memory_space<vmem>>, %arg9: memref<1x32xf32, #tpu.memory_space<vmem>>, %arg10: memref<32x32xbf16, #tpu.memory_space<vmem>>, %arg11: memref<1x32xf32, #tpu.memory_space<vmem>>, %arg12: memref<32x32xbf16, #tpu.memory_space<vmem>>, %arg13: memref<1x32xf32, #tpu.memory_space<vmem>>, %arg14: memref<32x32xbf16, #tpu.memory_space<vmem>>, %arg15: memref<1x32xf32, #tpu.memory_space<vmem>>, %arg16: memref<32x32xbf16, #tpu.memory_space<vmem>>, %arg17: memref<1x32xf32, #tpu.memory_space<vmem>>, %arg18: memref<1x32xf32, #tpu.memory_space<vmem>>, %arg19: memref<32x128xbf16, #tpu.memory_space<vmem>>, %arg20: memref<1x128xf32, #tpu.memory_space<vmem>>, %arg21: memref<128x32xbf16, #tpu.memory_space<vmem>>, %arg22: memref<1x32xf32, #tpu.memory_space<vmem>>, %arg23: memref<1x8x32xf32, #tpu.memory_space<vmem>>) attributes {dimension_semantics = [#tpu.dimension_semantics<parallel>], iteration_bounds = array<i64: 2>, scalar_prefetch = 0 : i64, scratch_operands = 0 : i64, tpu.core_type = #tpu.core_type<tc>, window_params = [{transform_indices = @transform_0, window_bounds = array<i64: 1, 8, 32>}, {transform_indices = @transform_1, window_bounds = array<i64: 1, 1, 8>}, {pipeline_mode = #tpu.pipeline_mode<synchronous>, transform_indices = @transform_2, window_bounds = array<i64: 8, 32>}, {pipeline_mode = #tpu.pipeline_mode<synchronous>, transform_indices = @transform_3, window_bounds = array<i64: 8, 32>}, {pipeline_mode = #tpu.pipeline_mode<synchronous>, transform_indices = @transform_4, window_bounds = array<i64: 1, 32>}, {pipeline_mode = #tpu.pipeline_mode<synchronous>, transform_indices = @transform_5, window_bounds = array<i64: 32, 32>}, {pipeline_mode = #tpu.pipeline_mode<synchronous>, transform_indices = @transform_6, window_bounds = array<i64: 1, 32>}, {pipeline_mode = #tpu.pipeline_mode<synchronous>, transform_indices = @transform_7, window_bounds = array<i64: 32, 32>}, {pipeline_mode = #tpu.pipeline_mode<synchronous>, transform_indices = @transform_8, window_bounds = array<i64: 1, 32>}, {pipeline_mode = #tpu.pipeline_mode<synchronous>, transform_indices = @transform_9, window_bounds = array<i64: 32, 32>}, {pipeline_mode = #tpu.pipeline_mode<synchronous>, transform_indices = @transform_10, window_bounds = array<i64: 1, 32>}, {pipeline_mode = #tpu.pipeline_mode<synchronous>, transform_indices = @transform_11, window_bounds = array<i64: 32, 32>}, {pipeline_mode = #tpu.pipeline_mode<synchronous>, transform_indices = @transform_12, window_bounds = array<i64: 1, 32>}, {pipeline_mode = #tpu.pipeline_mode<synchronous>, transform_indices = @transform_13, window_bounds = array<i64: 32, 32>}, {pipeline_mode = #tpu.pipeline_mode<synchronous>, transform_indices = @transform_14, window_bounds = array<i64: 1, 32>}, {pipeline_mode = #tpu.pipeline_mode<synchronous>, transform_indices = @transform_15, window_bounds = array<i64: 32, 32>}, {pipeline_mode = #tpu.pipeline_mode<synchronous>, transform_indices = @transform_16, window_bounds = array<i64: 1, 32>}, {pipeline_mode = #tpu.pipeline_mode<synchronous>, transform_indices = @transform_17, window_bounds = array<i64: 1, 32>}, {pipeline_mode = #tpu.pipeline_mode<synchronous>, transform_indices = @transform_18, window_bounds = array<i64: 32, 128>}, {pipeline_mode = #tpu.pipeline_mode<synchronous>, transform_indices = @transform_19, window_bounds = array<i64: 1, 128>}, {pipeline_mode = #tpu.pipeline_mode<synchronous>, transform_indices = @transform_20, window_bounds = array<i64: 128, 32>}, {pipeline_mode = #tpu.pipeline_mode<synchronous>, transform_indices = @transform_21, window_bounds = array<i64: 1, 32>}, {transform_indices = @transform_22, window_bounds = array<i64: 1, 8, 32>}]} {
    %c0 = arith.constant 0 : index
    %c0_0 = arith.constant 0 : index
    %c0_1 = arith.constant 0 : index
    %0 = vector.load %arg1[%c0, %c0_0, %c0_1] : memref<1x8x32xf32, #tpu.memory_space<vmem>>, vector<1x8x32xf32>
    %1 = vector.shape_cast %0 : vector<1x8x32xf32> to vector<8x32xf32>
    %c0_2 = arith.constant 0 : index
    %c0_3 = arith.constant 0 : index
    %c0_4 = arith.constant 0 : index
    %2 = vector.load %arg2[%c0_2, %c0_3, %c0_4] : memref<1x1x8xf32, #tpu.memory_space<vmem>>, vector<1x1x8xf32>
    %3 = vector.shape_cast %2 : vector<1x1x8xf32> to vector<1x8xf32>
    %c0_5 = arith.constant 0 : index
    %c0_6 = arith.constant 0 : index
    %4 = vector.load %arg3[%c0_5, %c0_6] : memref<8x32xf32, #tpu.memory_space<vmem>>, vector<8x32xf32>
    %c0_7 = arith.constant 0 : index
    %c0_8 = arith.constant 0 : index
    %5 = vector.load %arg4[%c0_7, %c0_8] : memref<8x32xf32, #tpu.memory_space<vmem>>, vector<8x32xf32>
    %c0_9 = arith.constant 0 : index
    %c0_10 = arith.constant 0 : index
    %6 = vector.load %arg5[%c0_9, %c0_10] : memref<1x32xf32, #tpu.memory_space<vmem>>, vector<1x32xf32>
    %7 = arith.mulf %1, %1 : vector<8x32xf32>
    %cst = arith.constant dense<0.000000e+00> : vector<8xf32>
    %8 = vector.multi_reduction <add>, %7, %cst [1] : vector<8x32xf32> to vector<8xf32>
    %9 = vector.shape_cast %8 : vector<8xf32> to vector<8x1xf32>
    %cst_11 = arith.constant 3.200000e+01 : f32
    %10 = vector.broadcast %cst_11 : f32 to vector<8x1xf32>
    %11 = arith.divf %9, %10 : vector<8x1xf32>
    %cst_12 = arith.constant 9.99999997E-7 : f32
    %12 = vector.broadcast %cst_12 : f32 to vector<8x1xf32>
    %13 = arith.addf %11, %12 : vector<8x1xf32>
    %14 = math.rsqrt %13 : vector<8x1xf32>
    %15 = vector.broadcast %14 : vector<8x1xf32> to vector<8x32xf32>
    %16 = arith.mulf %1, %15 : vector<8x32xf32>
    %17 = vector.broadcast %6 : vector<1x32xf32> to vector<8x32xf32>
    %18 = arith.mulf %16, %17 : vector<8x32xf32>
    %19 = arith.truncf %18 : vector<8x32xf32> to vector<8x32xbf16>
    %c0_13 = arith.constant 0 : index
    %c0_14 = arith.constant 0 : index
    %20 = vector.load %arg6[%c0_13, %c0_14] : memref<32x32xbf16, #tpu.memory_space<vmem>>, vector<32x32xbf16>
    %cst_15 = arith.constant dense<0.000000e+00> : vector<8x32xf32>
    %21 = tpu.matmul %19, %20, %cst_15 {dimension_numbers = #tpu.dot_dimension_numbers<[1], [0], [0], [1], [0, 0, 1, 1], [], []>} : vector<8x32xbf16>, vector<32x32xbf16>, vector<8x32xf32> -> vector<8x32xf32>
    %c0_16 = arith.constant 0 : index
    %c0_17 = arith.constant 0 : index
    %22 = vector.load %arg7[%c0_16, %c0_17] : memref<1x32xf32, #tpu.memory_space<vmem>>, vector<1x32xf32>
    %23 = vector.broadcast %22 : vector<1x32xf32> to vector<8x32xf32>
    %24 = arith.addf %21, %23 : vector<8x32xf32>
    %c0_18 = arith.constant 0 : index
    %c0_19 = arith.constant 0 : index
    %25 = vector.load %arg8[%c0_18, %c0_19] : memref<32x32xbf16, #tpu.memory_space<vmem>>, vector<32x32xbf16>
    %cst_20 = arith.constant dense<0.000000e+00> : vector<8x32xf32>
    %26 = tpu.matmul %19, %25, %cst_20 {dimension_numbers = #tpu.dot_dimension_numbers<[1], [0], [0], [1], [0, 0, 1, 1], [], []>} : vector<8x32xbf16>, vector<32x32xbf16>, vector<8x32xf32> -> vector<8x32xf32>
    %c0_21 = arith.constant 0 : index
    %c0_22 = arith.constant 0 : index
    %27 = vector.load %arg9[%c0_21, %c0_22] : memref<1x32xf32, #tpu.memory_space<vmem>>, vector<1x32xf32>
    %28 = vector.broadcast %27 : vector<1x32xf32> to vector<8x32xf32>
    %29 = arith.addf %26, %28 : vector<8x32xf32>
    %c0_23 = arith.constant 0 : index
    %c0_24 = arith.constant 0 : index
    %30 = vector.load %arg10[%c0_23, %c0_24] : memref<32x32xbf16, #tpu.memory_space<vmem>>, vector<32x32xbf16>
    %cst_25 = arith.constant dense<0.000000e+00> : vector<8x32xf32>
    %31 = tpu.matmul %19, %30, %cst_25 {dimension_numbers = #tpu.dot_dimension_numbers<[1], [0], [0], [1], [0, 0, 1, 1], [], []>} : vector<8x32xbf16>, vector<32x32xbf16>, vector<8x32xf32> -> vector<8x32xf32>
    %c0_26 = arith.constant 0 : index
    %c0_27 = arith.constant 0 : index
    %32 = vector.load %arg11[%c0_26, %c0_27] : memref<1x32xf32, #tpu.memory_space<vmem>>, vector<1x32xf32>
    %33 = vector.broadcast %32 : vector<1x32xf32> to vector<8x32xf32>
    %34 = arith.addf %31, %33 : vector<8x32xf32>
    %c0_28 = arith.constant 0 : index
    %c0_29 = arith.constant 0 : index
    %35 = vector.load %arg12[%c0_28, %c0_29] : memref<32x32xbf16, #tpu.memory_space<vmem>>, vector<32x32xbf16>
    %cst_30 = arith.constant dense<0.000000e+00> : vector<8x32xf32>
    %36 = tpu.matmul %19, %35, %cst_30 {dimension_numbers = #tpu.dot_dimension_numbers<[1], [0], [0], [1], [0, 0, 1, 1], [], []>} : vector<8x32xbf16>, vector<32x32xbf16>, vector<8x32xf32> -> vector<8x32xf32>
    %c0_31 = arith.constant 0 : index
    %c0_32 = arith.constant 0 : index
    %37 = vector.load %arg13[%c0_31, %c0_32] : memref<1x32xf32, #tpu.memory_space<vmem>>, vector<1x32xf32>
    %38 = vector.broadcast %37 : vector<1x32xf32> to vector<8x32xf32>
    %39 = arith.addf %36, %38 : vector<8x32xf32>
    %c0_33 = arith.constant 0 : index
    %c0_34 = arith.constant 0 : index
    %40 = vector.load %arg14[%c0_33, %c0_34] : memref<32x32xbf16, #tpu.memory_space<vmem>>, vector<32x32xbf16>
    %cst_35 = arith.constant dense<0.000000e+00> : vector<8x32xf32>
    %41 = tpu.matmul %19, %40, %cst_35 {dimension_numbers = #tpu.dot_dimension_numbers<[1], [0], [0], [1], [0, 0, 1, 1], [], []>} : vector<8x32xbf16>, vector<32x32xbf16>, vector<8x32xf32> -> vector<8x32xf32>
    %c0_36 = arith.constant 0 : index
    %c0_37 = arith.constant 0 : index
    %42 = vector.load %arg15[%c0_36, %c0_37] : memref<1x32xf32, #tpu.memory_space<vmem>>, vector<1x32xf32>
    %43 = vector.broadcast %42 : vector<1x32xf32> to vector<8x32xf32>
    %44 = arith.addf %41, %43 : vector<8x32xf32>
    %45 = arith.truncf %44 : vector<8x32xf32> to vector<8x32xbf16>
    %46 = arith.mulf %24, %4 : vector<8x32xf32>
    %47 = arith.mulf %29, %5 : vector<8x32xf32>
    %48 = arith.addf %46, %47 : vector<8x32xf32>
    %49 = arith.truncf %48 : vector<8x32xf32> to vector<8x32xbf16>
    %50 = arith.mulf %34, %4 : vector<8x32xf32>
    %51 = arith.mulf %39, %5 : vector<8x32xf32>
    %52 = arith.addf %50, %51 : vector<8x32xf32>
    %53 = arith.truncf %52 : vector<8x32xf32> to vector<8x32xbf16>
    %54 = vector.extract_strided_slice %49 {offsets = [0, 0], sizes = [8, 8], strides = [1, 1]} : vector<8x32xbf16> to vector<8x8xbf16>
    %55 = vector.extract_strided_slice %53 {offsets = [0, 0], sizes = [8, 8], strides = [1, 1]} : vector<8x32xbf16> to vector<8x8xbf16>
    %cst_38 = arith.constant dense<0.000000e+00> : vector<8x8xf32>
    %56 = tpu.matmul %54, %55, %cst_38 {dimension_numbers = #tpu.dot_dimension_numbers<[1], [1], [0], [0], [0, 0, 1, 0], [], []>} : vector<8x8xbf16>, vector<8x8xbf16>, vector<8x8xf32> -> vector<8x8xf32>
    %cst_39 = arith.constant 0.353553385 : f32
    %57 = vector.broadcast %cst_39 : f32 to vector<8x8xf32>
    %58 = arith.mulf %56, %57 : vector<8x8xf32>
    %59 = vector.broadcast %3 : vector<1x8xf32> to vector<8x8xf32>
    %60 = arith.addf %58, %59 : vector<8x8xf32>
    %cst_40 = arith.constant dense<0xFF800000> : vector<8xf32>
    %61 = vector.multi_reduction <maximumf>, %60, %cst_40 [1] : vector<8x8xf32> to vector<8xf32>
    %62 = vector.shape_cast %61 : vector<8xf32> to vector<8x1xf32>
    %63 = vector.broadcast %62 : vector<8x1xf32> to vector<8x8xf32>
    %64 = arith.subf %60, %63 : vector<8x8xf32>
    %65 = math.exp %64 : vector<8x8xf32>
    %cst_41 = arith.constant dense<0.000000e+00> : vector<8xf32>
    %66 = vector.multi_reduction <add>, %65, %cst_41 [1] : vector<8x8xf32> to vector<8xf32>
    %67 = vector.shape_cast %66 : vector<8xf32> to vector<8x1xf32>
    %68 = tpu.reciprocal %67 {approx = true} : vector<8x1xf32> -> vector<8x1xf32>
    %69 = vector.broadcast %68 : vector<8x1xf32> to vector<8x8xf32>
    %70 = arith.mulf %65, %69 : vector<8x8xf32>
    %71 = arith.truncf %70 : vector<8x8xf32> to vector<8x8xbf16>
    %72 = vector.extract_strided_slice %45 {offsets = [0, 0], sizes = [8, 8], strides = [1, 1]} : vector<8x32xbf16> to vector<8x8xbf16>
    %cst_42 = arith.constant dense<0.000000e+00> : vector<8x8xf32>
    %73 = tpu.matmul %71, %72, %cst_42 {dimension_numbers = #tpu.dot_dimension_numbers<[1], [0], [0], [1], [0, 0, 1, 1], [], []>} : vector<8x8xbf16>, vector<8x8xbf16>, vector<8x8xf32> -> vector<8x8xf32>
    %74 = vector.extract_strided_slice %49 {offsets = [0, 8], sizes = [8, 8], strides = [1, 1]} : vector<8x32xbf16> to vector<8x8xbf16>
    %75 = vector.extract_strided_slice %53 {offsets = [0, 8], sizes = [8, 8], strides = [1, 1]} : vector<8x32xbf16> to vector<8x8xbf16>
    %cst_43 = arith.constant dense<0.000000e+00> : vector<8x8xf32>
    %76 = tpu.matmul %74, %75, %cst_43 {dimension_numbers = #tpu.dot_dimension_numbers<[1], [1], [0], [0], [0, 0, 1, 0], [], []>} : vector<8x8xbf16>, vector<8x8xbf16>, vector<8x8xf32> -> vector<8x8xf32>
    %cst_44 = arith.constant 0.353553385 : f32
    %77 = vector.broadcast %cst_44 : f32 to vector<8x8xf32>
    %78 = arith.mulf %76, %77 : vector<8x8xf32>
    %79 = vector.broadcast %3 : vector<1x8xf32> to vector<8x8xf32>
    %80 = arith.addf %78, %79 : vector<8x8xf32>
    %cst_45 = arith.constant dense<0xFF800000> : vector<8xf32>
    %81 = vector.multi_reduction <maximumf>, %80, %cst_45 [1] : vector<8x8xf32> to vector<8xf32>
    %82 = vector.shape_cast %81 : vector<8xf32> to vector<8x1xf32>
    %83 = vector.broadcast %82 : vector<8x1xf32> to vector<8x8xf32>
    %84 = arith.subf %80, %83 : vector<8x8xf32>
    %85 = math.exp %84 : vector<8x8xf32>
    %cst_46 = arith.constant dense<0.000000e+00> : vector<8xf32>
    %86 = vector.multi_reduction <add>, %85, %cst_46 [1] : vector<8x8xf32> to vector<8xf32>
    %87 = vector.shape_cast %86 : vector<8xf32> to vector<8x1xf32>
    %88 = tpu.reciprocal %87 {approx = true} : vector<8x1xf32> -> vector<8x1xf32>
    %89 = vector.broadcast %88 : vector<8x1xf32> to vector<8x8xf32>
    %90 = arith.mulf %85, %89 : vector<8x8xf32>
    %91 = arith.truncf %90 : vector<8x8xf32> to vector<8x8xbf16>
    %92 = vector.extract_strided_slice %45 {offsets = [0, 8], sizes = [8, 8], strides = [1, 1]} : vector<8x32xbf16> to vector<8x8xbf16>
    %cst_47 = arith.constant dense<0.000000e+00> : vector<8x8xf32>
    %93 = tpu.matmul %91, %92, %cst_47 {dimension_numbers = #tpu.dot_dimension_numbers<[1], [0], [0], [1], [0, 0, 1, 1], [], []>} : vector<8x8xbf16>, vector<8x8xbf16>, vector<8x8xf32> -> vector<8x8xf32>
    %94 = vector.extract_strided_slice %49 {offsets = [0, 16], sizes = [8, 8], strides = [1, 1]} : vector<8x32xbf16> to vector<8x8xbf16>
    %95 = vector.extract_strided_slice %53 {offsets = [0, 16], sizes = [8, 8], strides = [1, 1]} : vector<8x32xbf16> to vector<8x8xbf16>
    %cst_48 = arith.constant dense<0.000000e+00> : vector<8x8xf32>
    %96 = tpu.matmul %94, %95, %cst_48 {dimension_numbers = #tpu.dot_dimension_numbers<[1], [1], [0], [0], [0, 0, 1, 0], [], []>} : vector<8x8xbf16>, vector<8x8xbf16>, vector<8x8xf32> -> vector<8x8xf32>
    %cst_49 = arith.constant 0.353553385 : f32
    %97 = vector.broadcast %cst_49 : f32 to vector<8x8xf32>
    %98 = arith.mulf %96, %97 : vector<8x8xf32>
    %99 = vector.broadcast %3 : vector<1x8xf32> to vector<8x8xf32>
    %100 = arith.addf %98, %99 : vector<8x8xf32>
    %cst_50 = arith.constant dense<0xFF800000> : vector<8xf32>
    %101 = vector.multi_reduction <maximumf>, %100, %cst_50 [1] : vector<8x8xf32> to vector<8xf32>
    %102 = vector.shape_cast %101 : vector<8xf32> to vector<8x1xf32>
    %103 = vector.broadcast %102 : vector<8x1xf32> to vector<8x8xf32>
    %104 = arith.subf %100, %103 : vector<8x8xf32>
    %105 = math.exp %104 : vector<8x8xf32>
    %cst_51 = arith.constant dense<0.000000e+00> : vector<8xf32>
    %106 = vector.multi_reduction <add>, %105, %cst_51 [1] : vector<8x8xf32> to vector<8xf32>
    %107 = vector.shape_cast %106 : vector<8xf32> to vector<8x1xf32>
    %108 = tpu.reciprocal %107 {approx = true} : vector<8x1xf32> -> vector<8x1xf32>
    %109 = vector.broadcast %108 : vector<8x1xf32> to vector<8x8xf32>
    %110 = arith.mulf %105, %109 : vector<8x8xf32>
    %111 = arith.truncf %110 : vector<8x8xf32> to vector<8x8xbf16>
    %112 = vector.extract_strided_slice %45 {offsets = [0, 16], sizes = [8, 8], strides = [1, 1]} : vector<8x32xbf16> to vector<8x8xbf16>
    %cst_52 = arith.constant dense<0.000000e+00> : vector<8x8xf32>
    %113 = tpu.matmul %111, %112, %cst_52 {dimension_numbers = #tpu.dot_dimension_numbers<[1], [0], [0], [1], [0, 0, 1, 1], [], []>} : vector<8x8xbf16>, vector<8x8xbf16>, vector<8x8xf32> -> vector<8x8xf32>
    %114 = vector.extract_strided_slice %49 {offsets = [0, 24], sizes = [8, 8], strides = [1, 1]} : vector<8x32xbf16> to vector<8x8xbf16>
    %115 = vector.extract_strided_slice %53 {offsets = [0, 24], sizes = [8, 8], strides = [1, 1]} : vector<8x32xbf16> to vector<8x8xbf16>
    %cst_53 = arith.constant dense<0.000000e+00> : vector<8x8xf32>
    %116 = tpu.matmul %114, %115, %cst_53 {dimension_numbers = #tpu.dot_dimension_numbers<[1], [1], [0], [0], [0, 0, 1, 0], [], []>} : vector<8x8xbf16>, vector<8x8xbf16>, vector<8x8xf32> -> vector<8x8xf32>
    %cst_54 = arith.constant 0.353553385 : f32
    %117 = vector.broadcast %cst_54 : f32 to vector<8x8xf32>
    %118 = arith.mulf %116, %117 : vector<8x8xf32>
    %119 = vector.broadcast %3 : vector<1x8xf32> to vector<8x8xf32>
    %120 = arith.addf %118, %119 : vector<8x8xf32>
    %cst_55 = arith.constant dense<0xFF800000> : vector<8xf32>
    %121 = vector.multi_reduction <maximumf>, %120, %cst_55 [1] : vector<8x8xf32> to vector<8xf32>
    %122 = vector.shape_cast %121 : vector<8xf32> to vector<8x1xf32>
    %123 = vector.broadcast %122 : vector<8x1xf32> to vector<8x8xf32>
    %124 = arith.subf %120, %123 : vector<8x8xf32>
    %125 = math.exp %124 : vector<8x8xf32>
    %cst_56 = arith.constant dense<0.000000e+00> : vector<8xf32>
    %126 = vector.multi_reduction <add>, %125, %cst_56 [1] : vector<8x8xf32> to vector<8xf32>
    %127 = vector.shape_cast %126 : vector<8xf32> to vector<8x1xf32>
    %128 = tpu.reciprocal %127 {approx = true} : vector<8x1xf32> -> vector<8x1xf32>
    %129 = vector.broadcast %128 : vector<8x1xf32> to vector<8x8xf32>
    %130 = arith.mulf %125, %129 : vector<8x8xf32>
    %131 = arith.truncf %130 : vector<8x8xf32> to vector<8x8xbf16>
    %132 = vector.extract_strided_slice %45 {offsets = [0, 24], sizes = [8, 8], strides = [1, 1]} : vector<8x32xbf16> to vector<8x8xbf16>
    %cst_57 = arith.constant dense<0.000000e+00> : vector<8x8xf32>
    %133 = tpu.matmul %131, %132, %cst_57 {dimension_numbers = #tpu.dot_dimension_numbers<[1], [0], [0], [1], [0, 0, 1, 1], [], []>} : vector<8x8xbf16>, vector<8x8xbf16>, vector<8x8xf32> -> vector<8x8xf32>
    %134 = tpu.concatenate %73, %93, %113, %133 in 1 : vector<8x8xf32>, vector<8x8xf32>, vector<8x8xf32>, vector<8x8xf32> -> vector<8x32xf32>
    %135 = arith.truncf %134 : vector<8x32xf32> to vector<8x32xbf16>
    %c0_58 = arith.constant 0 : index
    %c0_59 = arith.constant 0 : index
    %136 = vector.load %arg16[%c0_58, %c0_59] : memref<32x32xbf16, #tpu.memory_space<vmem>>, vector<32x32xbf16>
    %cst_60 = arith.constant dense<0.000000e+00> : vector<8x32xf32>
    %137 = tpu.matmul %135, %136, %cst_60 {dimension_numbers = #tpu.dot_dimension_numbers<[1], [0], [0], [1], [0, 0, 1, 1], [], []>} : vector<8x32xbf16>, vector<32x32xbf16>, vector<8x32xf32> -> vector<8x32xf32>
    %c0_61 = arith.constant 0 : index
    %c0_62 = arith.constant 0 : index
    %138 = vector.load %arg17[%c0_61, %c0_62] : memref<1x32xf32, #tpu.memory_space<vmem>>, vector<1x32xf32>
    %139 = vector.broadcast %138 : vector<1x32xf32> to vector<8x32xf32>
    %140 = arith.addf %137, %139 : vector<8x32xf32>
    %141 = arith.addf %1, %140 : vector<8x32xf32>
    %c0_63 = arith.constant 0 : index
    %c0_64 = arith.constant 0 : index
    %142 = vector.load %arg18[%c0_63, %c0_64] : memref<1x32xf32, #tpu.memory_space<vmem>>, vector<1x32xf32>
    %143 = arith.mulf %141, %141 : vector<8x32xf32>
    %cst_65 = arith.constant dense<0.000000e+00> : vector<8xf32>
    %144 = vector.multi_reduction <add>, %143, %cst_65 [1] : vector<8x32xf32> to vector<8xf32>
    %145 = vector.shape_cast %144 : vector<8xf32> to vector<8x1xf32>
    %cst_66 = arith.constant 3.200000e+01 : f32
    %146 = vector.broadcast %cst_66 : f32 to vector<8x1xf32>
    %147 = arith.divf %145, %146 : vector<8x1xf32>
    %cst_67 = arith.constant 9.99999997E-7 : f32
    %148 = vector.broadcast %cst_67 : f32 to vector<8x1xf32>
    %149 = arith.addf %147, %148 : vector<8x1xf32>
    %150 = math.rsqrt %149 : vector<8x1xf32>
    %151 = vector.broadcast %150 : vector<8x1xf32> to vector<8x32xf32>
    %152 = arith.mulf %141, %151 : vector<8x32xf32>
    %153 = vector.broadcast %142 : vector<1x32xf32> to vector<8x32xf32>
    %154 = arith.mulf %152, %153 : vector<8x32xf32>
    %155 = arith.truncf %154 : vector<8x32xf32> to vector<8x32xbf16>
    %c0_68 = arith.constant 0 : index
    %c0_69 = arith.constant 0 : index
    %156 = vector.load %arg19[%c0_68, %c0_69] : memref<32x128xbf16, #tpu.memory_space<vmem>>, vector<32x128xbf16>
    %cst_70 = arith.constant dense<0.000000e+00> : vector<8x128xf32>
    %157 = tpu.matmul %155, %156, %cst_70 {dimension_numbers = #tpu.dot_dimension_numbers<[1], [0], [0], [1], [0, 0, 1, 1], [], []>} : vector<8x32xbf16>, vector<32x128xbf16>, vector<8x128xf32> -> vector<8x128xf32>
    %c0_71 = arith.constant 0 : index
    %c0_72 = arith.constant 0 : index
    %158 = vector.load %arg20[%c0_71, %c0_72] : memref<1x128xf32, #tpu.memory_space<vmem>>, vector<1x128xf32>
    %159 = vector.broadcast %158 : vector<1x128xf32> to vector<8x128xf32>
    %160 = arith.addf %157, %159 : vector<8x128xf32>
    %161 = arith.mulf %160, %160 : vector<8x128xf32>
    %162 = arith.mulf %160, %161 : vector<8x128xf32>
    %cst_73 = arith.constant 4.471500e-02 : f32
    %163 = vector.broadcast %cst_73 : f32 to vector<8x128xf32>
    %164 = arith.mulf %163, %162 : vector<8x128xf32>
    %165 = arith.addf %160, %164 : vector<8x128xf32>
    %cst_74 = arith.constant 0.797884583 : f32
    %166 = vector.broadcast %cst_74 : f32 to vector<8x128xf32>
    %167 = arith.mulf %166, %165 : vector<8x128xf32>
    %168 = math.tanh %167 : vector<8x128xf32>
    %cst_75 = arith.constant 1.000000e+00 : f32
    %169 = vector.broadcast %cst_75 : f32 to vector<8x128xf32>
    %170 = arith.addf %169, %168 : vector<8x128xf32>
    %cst_76 = arith.constant 5.000000e-01 : f32
    %171 = vector.broadcast %cst_76 : f32 to vector<8x128xf32>
    %172 = arith.mulf %171, %170 : vector<8x128xf32>
    %173 = arith.mulf %160, %172 : vector<8x128xf32>
    %174 = arith.truncf %173 : vector<8x128xf32> to vector<8x128xbf16>
    %c0_77 = arith.constant 0 : index
    %c0_78 = arith.constant 0 : index
    %175 = vector.load %arg21[%c0_77, %c0_78] : memref<128x32xbf16, #tpu.memory_space<vmem>>, vector<128x32xbf16>
    %cst_79 = arith.constant dense<0.000000e+00> : vector<8x32xf32>
    %176 = tpu.matmul %174, %175, %cst_79 {dimension_numbers = #tpu.dot_dimension_numbers<[1], [0], [0], [1], [0, 0, 1, 1], [], []>} : vector<8x128xbf16>, vector<128x32xbf16>, vector<8x32xf32> -> vector<8x32xf32>
    %c0_80 = arith.constant 0 : index
    %c0_81 = arith.constant 0 : index
    %177 = vector.load %arg22[%c0_80, %c0_81] : memref<1x32xf32, #tpu.memory_space<vmem>>, vector<1x32xf32>
    %178 = vector.broadcast %177 : vector<1x32xf32> to vector<8x32xf32>
    %179 = arith.addf %176, %178 : vector<8x32xf32>
    %180 = arith.addf %141, %179 : vector<8x32xf32>
    %c0_82 = arith.constant 0 : index
    %c0_83 = arith.constant 0 : index
    %c0_84 = arith.constant 0 : index
    %181 = vector.load %arg23[%c0_82, %c0_83, %c0_84] : memref<1x8x32xf32, #tpu.memory_space<vmem>>, vector<1x8x32xf32>
    %182 = vector.shape_cast %181 : vector<1x8x32xf32> to vector<8x32xf32>
    %183 = vector.shape_cast %180 : vector<8x32xf32> to vector<1x8x32xf32>
    tpu.vector_store %arg23[%c0_82, %c0_83, %c0_84], %183 {strides = array<i32>} : memref<1x8x32xf32, #tpu.memory_space<vmem>>, vector<1x8x32xf32>,
    return
  }
  func.func @transform_0(%arg0: i32) -> (i32, i32, i32) {
    %c0_i32 = arith.constant 0 : i32
    %c0_i32_0 = arith.constant 0 : i32
    %c0_i32_1 = arith.constant 0 : i32
    return %arg0, %c0_i32, %c0_i32_0 : i32, i32, i32
  }
  func.func @transform_1(%arg0: i32) -> (i32, i32, i32) {
    %c0_i32 = arith.constant 0 : i32
    %c0_i32_0 = arith.constant 0 : i32
    %c0_i32_1 = arith.constant 0 : i32
    return %arg0, %c0_i32, %c0_i32_0 : i32, i32, i32
  }
  func.func @transform_2(%arg0: i32) -> (i32, i32) {
    %c0_i32 = arith.constant 0 : i32
    %c0_i32_0 = arith.constant 0 : i32
    %c0_i32_1 = arith.constant 0 : i32
    return %c0_i32, %c0_i32_0 : i32, i32
  }
  func.func @transform_3(%arg0: i32) -> (i32, i32) {
    %c0_i32 = arith.constant 0 : i32
    %c0_i32_0 = arith.constant 0 : i32
    %c0_i32_1 = arith.constant 0 : i32
    return %c0_i32, %c0_i32_0 : i32, i32
  }
  func.func @transform_4(%arg0: i32) -> (i32, i32) {
    %c0_i32 = arith.constant 0 : i32
    %c0_i32_0 = arith.constant 0 : i32
    %c0_i32_1 = arith.constant 0 : i32
    return %c0_i32, %c0_i32_0 : i32, i32
  }
  func.func @transform_5(%arg0: i32) -> (i32, i32) {
    %c0_i32 = arith.constant 0 : i32
    %c0_i32_0 = arith.constant 0 : i32
    %c0_i32_1 = arith.constant 0 : i32
    return %c0_i32, %c0_i32_0 : i32, i32
  }
  func.func @transform_6(%arg0: i32) -> (i32, i32) {
    %c0_i32 = arith.constant 0 : i32
    %c0_i32_0 = arith.constant 0 : i32
    %c0_i32_1 = arith.constant 0 : i32
    return %c0_i32, %c0_i32_0 : i32, i32
  }
  func.func @transform_7(%arg0: i32) -> (i32, i32) {
    %c0_i32 = arith.constant 0 : i32
    %c0_i32_0 = arith.constant 0 : i32
    %c0_i32_1 = arith.constant 0 : i32
    return %c0_i32, %c0_i32_0 : i32, i32
  }
  func.func @transform_8(%arg0: i32) -> (i32, i32) {
    %c0_i32 = arith.constant 0 : i32
    %c0_i32_0 = arith.constant 0 : i32
    %c0_i32_1 = arith.constant 0 : i32
    return %c0_i32, %c0_i32_0 : i32, i32
  }
  func.func @transform_9(%arg0: i32) -> (i32, i32) {
    %c0_i32 = arith.constant 0 : i32
    %c0_i32_0 = arith.constant 0 : i32
    %c0_i32_1 = arith.constant 0 : i32
    return %c0_i32, %c0_i32_0 : i32, i32
  }
  func.func @transform_10(%arg0: i32) -> (i32, i32) {
    %c0_i32 = arith.constant 0 : i32
    %c0_i32_0 = arith.constant 0 : i32
    %c0_i32_1 = arith.constant 0 : i32
    return %c0_i32, %c0_i32_0 : i32, i32
  }
  func.func @transform_11(%arg0: i32) -> (i32, i32) {
    %c0_i32 = arith.constant 0 : i32
    %c0_i32_0 = arith.constant 0 : i32
    %c0_i32_1 = arith.constant 0 : i32
    return %c0_i32, %c0_i32_0 : i32, i32
  }
  func.func @transform_12(%arg0: i32) -> (i32, i32) {
    %c0_i32 = arith.constant 0 : i32
    %c0_i32_0 = arith.constant 0 : i32
    %c0_i32_1 = arith.constant 0 : i32
    return %c0_i32, %c0_i32_0 : i32, i32
  }
  func.func @transform_13(%arg0: i32) -> (i32, i32) {
    %c0_i32 = arith.constant 0 : i32
    %c0_i32_0 = arith.constant 0 : i32
    %c0_i32_1 = arith.constant 0 : i32
    return %c0_i32, %c0_i32_0 : i32, i32
  }
  func.func @transform_14(%arg0: i32) -> (i32, i32) {
    %c0_i32 = arith.constant 0 : i32
    %c0_i32_0 = arith.constant 0 : i32
    %c0_i32_1 = arith.constant 0 : i32
    return %c0_i32, %c0_i32_0 : i32, i32
  }
  func.func @transform_15(%arg0: i32) -> (i32, i32) {
    %c0_i32 = arith.constant 0 : i32
    %c0_i32_0 = arith.constant 0 : i32
    %c0_i32_1 = arith.constant 0 : i32
    return %c0_i32, %c0_i32_0 : i32, i32
  }
  func.func @transform_16(%arg0: i32) -> (i32, i32) {
    %c0_i32 = arith.constant 0 : i32
    %c0_i32_0 = arith.constant 0 : i32
    %c0_i32_1 = arith.constant 0 : i32
    return %c0_i32, %c0_i32_0 : i32, i32
  }
  func.func @transform_17(%arg0: i32) -> (i32, i32) {
    %c0_i32 = arith.constant 0 : i32
    %c0_i32_0 = arith.constant 0 : i32
    %c0_i32_1 = arith.constant 0 : i32
    return %c0_i32, %c0_i32_0 : i32, i32
  }
  func.func @transform_18(%arg0: i32) -> (i32, i32) {
    %c0_i32 = arith.constant 0 : i32
    %c0_i32_0 = arith.constant 0 : i32
    %c0_i32_1 = arith.constant 0 : i32
    return %c0_i32, %c0_i32_0 : i32, i32
  }
  func.func @transform_19(%arg0: i32) -> (i32, i32) {
    %c0_i32 = arith.constant 0 : i32
    %c0_i32_0 = arith.constant 0 : i32
    %c0_i32_1 = arith.constant 0 : i32
    return %c0_i32, %c0_i32_0 : i32, i32
  }
  func.func @transform_20(%arg0: i32) -> (i32, i32) {
    %c0_i32 = arith.constant 0 : i32
    %c0_i32_0 = arith.constant 0 : i32
    %c0_i32_1 = arith.constant 0 : i32
    return %c0_i32, %c0_i32_0 : i32, i32
  }
  func.func @transform_21(%arg0: i32) -> (i32, i32) {
    %c0_i32 = arith.constant 0 : i32
    %c0_i32_0 = arith.constant 0 : i32
    %c0_i32_1 = arith.constant 0 : i32
    return %c0_i32, %c0_i32_0 : i32, i32
  }
  func.func @transform_22(%arg0: i32) -> (i32, i32, i32) {
    %c0_i32 = arith.constant 0 : i32
    %c0_i32_0 = arith.constant 0 : i32
    %c0_i32_1 = arith.constant 0 : i32
    return %arg0, %c0_i32, %c0_i32_0 : i32, i32, i32
  }
}

</mosaic_0001>

<llo_original>
// kernel: tpu_custom_call.1
$region0: #{tpu_custom_call.1}
  #allocation0 [shape = 'u32[]', space=smem, size = 0x4, offset = 0x4, fixed_abs, tag = 'smem constant byte address 0x4 - core index']
  #allocation1 [shape = 'u32[144,128]{1,0:T(1,128)}', space=vmem, size = 0x12000, scoped, tag = 'internal scratch']
  %s0 = inlined_call_operand.hbm [shape: f32[2,8,32], index: 0, kind: input, shape index: {}, may-alias: {0,22}]
  %s1 = inlined_call_operand.hbm [shape: f32[2,1,8], index: 1, kind: input, shape index: {}]
  %s2 = inlined_call_operand.hbm [shape: f32[8,32], index: 2, kind: input, shape index: {}]
  %s3 = inlined_call_operand.hbm [shape: f32[8,32], index: 3, kind: input, shape index: {}]
  %s4 = inlined_call_operand.hbm [shape: f32[1,32], index: 4, kind: input, shape index: {}]
  %s5 = inlined_call_operand.vmem [shape: bf16[32,32], index: 5, kind: input, shape index: {}]
  %s6 = inlined_call_operand.hbm [shape: f32[1,32], index: 6, kind: input, shape index: {}]
  %s7 = inlined_call_operand.vmem [shape: bf16[32,32], index: 7, kind: input, shape index: {}]
  %s8 = inlined_call_operand.hbm [shape: f32[1,32], index: 8, kind: input, shape index: {}]
  %s9 = inlined_call_operand.vmem [shape: bf16[32,32], index: 9, kind: input, shape index: {}]
  %s10 = inlined_call_operand.vmem [shape: f32[1,32], index: 10, kind: input, shape index: {}]
  %s11 = inlined_call_operand.vmem [shape: bf16[32,32], index: 11, kind: input, shape index: {}]
  %s12 = inlined_call_operand.vmem [shape: f32[1,32], index: 12, kind: input, shape index: {}]
  %s13 = inlined_call_operand.vmem [shape: bf16[32,32], index: 13, kind: input, shape index: {}]
  %s14 = inlined_call_operand.vmem [shape: f32[1,32], index: 14, kind: input, shape index: {}]
  %s15 = inlined_call_operand.vmem [shape: bf16[32,32], index: 15, kind: input, shape index: {}]
  %s16 = inlined_call_operand.vmem [shape: f32[1,32], index: 16, kind: input, shape index: {}]
  %s17 = inlined_call_operand.vmem [shape: f32[1,32], index: 17, kind: input, shape index: {}]
  %s18 = inlined_call_operand.vmem [shape: bf16[32,128], index: 18, kind: input, shape index: {}]
  %s19 = inlined_call_operand.vmem [shape: f32[1,128], index: 19, kind: input, shape index: {}]
  %s20 = inlined_call_operand.vmem [shape: bf16[128,32], index: 20, kind: input, shape index: {}]
  %s21 = inlined_call_operand.vmem [shape: f32[1,32], index: 21, kind: input, shape index: {}]
  %s22 = inlined_call_operand.hbm [shape: f32[2,8,32], index: 22, kind: output, shape index: {}, may-alias: {0,22}]
  %s23 = sld [smem:[#allocation0]]
  $region149: #{tpu_custom_call.1} parent=0
    _
  %s25 = ssub.s32 1, %s23
  %s26 = scalar_select 0, %s25, %s23
  $region1: #{tpu_custom_call.1} parent=0
    #allocation2 [shape = 'u8[8192]{0}', space=vmem, size = 0x2000, scoped, tag = 'input window, operand 0']
    #allocation3 [shape = 's32[2]{0}', space=sflag, size = 0x8, scoped, tag = 'scoped memory for tpu_custom_call.1']
    #allocation4 [shape = 's32[2]{0}', space=sflag, size = 0x8, scoped, tag = 'scoped memory for tpu_custom_call.1']
    #allocation5 [shape = 'u8[1024]{0}', space=vmem, size = 0x400, scoped, tag = 'input window, operand 1']
    #allocation6 [shape = 's32[2]{0}', space=sflag, size = 0x8, scoped, tag = 'scoped memory for tpu_custom_call.1']
    #allocation7 [shape = 'u8[4096]{0}', space=vmem, size = 0x1000, scoped, tag = 'input window, operand 2, single buffered']
    #allocation8 [shape = 'u8[4096]{0}', space=vmem, size = 0x1000, scoped, tag = 'input window, operand 3, single buffered']
    #allocation9 [shape = 's32[1]{0}', space=sflag, size = 0x4, scoped, tag = 'scoped memory for tpu_custom_call.1']
    #allocation10 [shape = 'u8[512]{0}', space=vmem, size = 0x400, scoped, tag = 'input window, operand 4, single buffered']
    #allocation11 [shape = 'u8[512]{0}', space=vmem, size = 0x400, scoped, tag = 'input window, operand 6, single buffered']
    #allocation12 [shape = 's32[1]{0}', space=sflag, size = 0x4, scoped, tag = 'scoped memory for tpu_custom_call.1']
    #allocation13 [shape = 'u8[512]{0}', space=vmem, size = 0x400, scoped, tag = 'input window, operand 8, single buffered']
    #allocation14 [shape = 'u8[8192]{0}', space=vmem, size = 0x2000, scoped, tag = 'output window, operand 0']
    %27 = vsyncpa [#allocation3], 0
    %s28 = scalar_lea.sflag [#allocation3], 1
    %29 = vsyncpa %s28, 0
    %30 = vsyncpa [#allocation6], 0
    %s31 = scalar_lea.sflag [#allocation6], 1
    %32 = vsyncpa %s31, 0
    %33 = vsyncpa [#allocation9], 0
    %34 = vsyncpa [#allocation12], 0
    %35 = vsyncpa [#allocation4], 0
    %s36 = scalar_lea.sflag [#allocation4], 1
    %37 = vsyncpa %s36, 0
    loop: start=0, step=1, limit=4
    $region2: #{tpu_custom_call.1} parent=1 // loop_pre_header
      _
    $region3: #{tpu_custom_call.1} parent=1 // loop_header
      %s39 = sphi 0, %s43
      %p40 = scmp.ge.s32.totalorder %s39, 4
      %s49 = sphi 0, %s51
      %s52 = sphi 0, %s49
      %s53 = sphi 0, %s52
      %s69 = sphi 0, %s53
      %s75 = sphi 0, %s77
      %s78 = sphi 0, %s75
      %s79 = sphi 0, %s78
      %s95 = sphi 0, %s79
      %s99 = sphi 0, %s99
      %s101 = sphi 0, %s99
      %s102 = sphi 0, %s101
      %s116 = sphi 0, %s102
      %s120 = sphi 0, %s120
      %s122 = sphi 0, %s120
      %s123 = sphi 0, %s122
      %s137 = sphi 0, %s123
      %s141 = sphi 0, %s141
      %s143 = sphi 0, %s141
      %s144 = sphi 0, %s143
      %s158 = sphi 0, %s144
      %s162 = sphi 0, %s162
      %s164 = sphi 0, %s162
      %s165 = sphi 0, %s164
      %s179 = sphi 0, %s165
      %s183 = sphi 0, %s183
      %s185 = sphi 0, %s183
      %s186 = sphi 0, %s185
      %s200 = sphi 0, %s186
      %s204 = sphi 0, %s204
      %s206 = sphi 0, %s204
      %s207 = sphi 0, %s206
      %s221 = sphi 0, %s207
      %s225 = sphi 0, %s225
      %s227 = sphi 0, %s225
      %s228 = sphi 0, %s227
      %s242 = sphi 0, %s228
      %s246 = sphi 0, %s246
      %s248 = sphi 0, %s246
      %s249 = sphi 0, %s248
      %s263 = sphi 0, %s249
      %s267 = sphi 0, %s267
      %s269 = sphi 0, %s267
      %s270 = sphi 0, %s269
      %s284 = sphi 0, %s270
      %s288 = sphi 0, %s288
      %s290 = sphi 0, %s288
      %s291 = sphi 0, %s290
      %s305 = sphi 0, %s291
      %s309 = sphi 0, %s309
      %s311 = sphi 0, %s309
      %s312 = sphi 0, %s311
      %s326 = sphi 0, %s312
      %s330 = sphi 0, %s330
      %s332 = sphi 0, %s330
      %s333 = sphi 0, %s332
      %s347 = sphi 0, %s333
      %s351 = sphi 0, %s351
      %s353 = sphi 0, %s351
      %s354 = sphi 0, %s353
      %s368 = sphi 0, %s354
      %s372 = sphi 0, %s372
      %s374 = sphi 0, %s372
      %s375 = sphi 0, %s374
      %s389 = sphi 0, %s375
      %s393 = sphi 0, %s393
      %s395 = sphi 0, %s393
      %s396 = sphi 0, %s395
      %s410 = sphi 0, %s396
      %s414 = sphi 0, %s414
      %s416 = sphi 0, %s414
      %s417 = sphi 0, %s416
      %s431 = sphi 0, %s417
      %s435 = sphi 0, %s435
      %s437 = sphi 0, %s435
      %s438 = sphi 0, %s437
      %s452 = sphi 0, %s438
      %s456 = sphi 0, %s456
      %s458 = sphi 0, %s456
      %s459 = sphi 0, %s458
      %s473 = sphi 0, %s459
      %s477 = sphi 0, %s477
      %s479 = sphi 0, %s477
      %s480 = sphi 0, %s479
      %s494 = sphi 0, %s480
      %s498 = sphi 0, %s498
      %s500 = sphi 0, %s498
      %s501 = sphi 0, %s500
      %s515 = sphi 0, %s501
      %s521 = sphi 0, %s523
      %s524 = sphi 0, %s521
      %s525 = sphi 0, %s524
      %s541 = sphi 0, %s525
    $region4: #{tpu_custom_call.1} parent=1 // loop_header_branch
      %42 = sbr.rel (%p40) target = $region8
    $region5: #{tpu_custom_call.1} parent=1 // loop_body
      %s44 = ssub.s32 %s39, 1
      %s45 = ssub.s32 %s39, 2
      %s46 = sadd.s32 %s39, 1
      %s47 = ssub.s32 %s39, %s46
      %p48 = scmp.eq.s32.totalorder %s47, 0
      %s50 = sadd.s32 %s49, 1
      %s51 = scalar_select %p48, %s49, %s50
      %p54 = pneg %p48
      %p55 = scmp.eq.s32.totalorder %s39, 1
      %p56 = por %p54, %p55
      %p57 = scmp.ne.s32.totalorder %s49, %s52
      %p58 = scmp.eq.s32.totalorder %s39, 0
      %p59 = por %p57, %p58
      %p60 = scmp.ne.s32.totalorder %s49, %s52
      %p61 = scmp.eq.s32.totalorder %s44, 1
      %p62 = por %p60, %p61
      %p63 = scmp.ne.s32.totalorder %s52, %s53
      %p64 = scmp.eq.s32.totalorder %s44, 0
      %p65 = por %p63, %p64
      %p66 = scmp.ne.s32.totalorder %s52, %s53
      %p67 = scmp.eq.s32.totalorder %s45, 1
      %p68 = por %p66, %p67
      %p70 = scmp.ne.s32.totalorder %s53, %s69
      %p71 = scmp.eq.s32.totalorder %s45, 0
      %p72 = por %p70, %p71
      %s73 = ssub.s32 %s39, %s46
      %p74 = scmp.eq.s32.totalorder %s73, 0
      %s76 = sadd.s32 %s75, 1
      %s77 = scalar_select %p74, %s75, %s76
      %p80 = pneg %p74
      %p81 = scmp.eq.s32.totalorder %s39, 1
      %p82 = por %p80, %p81
      %p83 = scmp.ne.s32.totalorder %s75, %s78
      %p84 = scmp.eq.s32.totalorder %s39, 0
      %p85 = por %p83, %p84
      %p86 = scmp.ne.s32.totalorder %s75, %s78
      %p87 = scmp.eq.s32.totalorder %s44, 1
      %p88 = por %p86, %p87
      %p89 = scmp.ne.s32.totalorder %s78, %s79
      %p90 = scmp.eq.s32.totalorder %s44, 0
      %p91 = por %p89, %p90
      %p92 = scmp.ne.s32.totalorder %s78, %s79
      %p93 = scmp.eq.s32.totalorder %s45, 1
      %p94 = por %p92, %p93
      %p96 = scmp.ne.s32.totalorder %s79, %s95
      %p97 = scmp.eq.s32.totalorder %s45, 0
      %p98 = por %p96, %p97
      %s100 = sadd.s32 %s99, 1
      %p103 = scmp.eq.s32.totalorder %s39, 1
      %p104 = scmp.ne.s32.totalorder %s99, %s101
      %p105 = scmp.eq.s32.totalorder %s39, 0
      %p106 = por %p104, %p105
      %p107 = scmp.ne.s32.totalorder %s99, %s101
      %p108 = scmp.eq.s32.totalorder %s44, 1
      %p109 = por %p107, %p108
      %p110 = scmp.ne.s32.totalorder %s101, %s102
      %p111 = scmp.eq.s32.totalorder %s44, 0
      %p112 = por %p110, %p111
      %p113 = scmp.ne.s32.totalorder %s101, %s102
      %p114 = scmp.eq.s32.totalorder %s45, 1
      %p115 = por %p113, %p114
      %p117 = scmp.ne.s32.totalorder %s102, %s116
      %p118 = scmp.eq.s32.totalorder %s45, 0
      %p119 = por %p117, %p118
      %s121 = sadd.s32 %s120, 1
      %p124 = scmp.eq.s32.totalorder %s39, 1
      %p125 = scmp.ne.s32.totalorder %s120, %s122
      %p126 = scmp.eq.s32.totalorder %s39, 0
      %p127 = por %p125, %p126
      %p128 = scmp.ne.s32.totalorder %s120, %s122
      %p129 = scmp.eq.s32.totalorder %s44, 1
      %p130 = por %p128, %p129
      %p131 = scmp.ne.s32.totalorder %s122, %s123
      %p132 = scmp.eq.s32.totalorder %s44, 0
      %p133 = por %p131, %p132
      %p134 = scmp.ne.s32.totalorder %s122, %s123
      %p135 = scmp.eq.s32.totalorder %s45, 1
      %p136 = por %p134, %p135
      %p138 = scmp.ne.s32.totalorder %s123, %s137
      %p139 = scmp.eq.s32.totalorder %s45, 0
      %p140 = por %p138, %p139
      %s142 = sadd.s32 %s141, 1
      %p145 = scmp.eq.s32.totalorder %s39, 1
      %p146 = scmp.ne.s32.totalorder %s141, %s143
      %p147 = scmp.eq.s32.totalorder %s39, 0
      %p148 = por %p146, %p147
      %p149 = scmp.ne.s32.totalorder %s141, %s143
      %p150 = scmp.eq.s32.totalorder %s44, 1
      %p151 = por %p149, %p150
      %p152 = scmp.ne.s32.totalorder %s143, %s144
      %p153 = scmp.eq.s32.totalorder %s44, 0
      %p154 = por %p152, %p153
      %p155 = scmp.ne.s32.totalorder %s143, %s144
      %p156 = scmp.eq.s32.totalorder %s45, 1
      %p157 = por %p155, %p156
      %p159 = scmp.ne.s32.totalorder %s144, %s158
      %p160 = scmp.eq.s32.totalorder %s45, 0
      %p161 = por %p159, %p160
      %s163 = sadd.s32 %s162, 1
      %p166 = scmp.eq.s32.totalorder %s39, 1
      %p167 = scmp.ne.s32.totalorder %s162, %s164
      %p168 = scmp.eq.s32.totalorder %s39, 0
      %p169 = por %p167, %p168
      %p170 = scmp.ne.s32.totalorder %s162, %s164
      %p171 = scmp.eq.s32.totalorder %s44, 1
      %p172 = por %p170, %p171
      %p173 = scmp.ne.s32.totalorder %s164, %s165
      %p174 = scmp.eq.s32.totalorder %s44, 0
      %p175 = por %p173, %p174
      %p176 = scmp.ne.s32.totalorder %s164, %s165
      %p177 = scmp.eq.s32.totalorder %s45, 1
      %p178 = por %p176, %p177
      %p180 = scmp.ne.s32.totalorder %s165, %s179
      %p181 = scmp.eq.s32.totalorder %s45, 0
      %p182 = por %p180, %p181
      %s184 = sadd.s32 %s183, 1
      %p187 = scmp.eq.s32.totalorder %s39, 1
      %p188 = scmp.ne.s32.totalorder %s183, %s185
      %p189 = scmp.eq.s32.totalorder %s39, 0
      %p190 = por %p188, %p189
      %p191 = scmp.ne.s32.totalorder %s183, %s185
      %p192 = scmp.eq.s32.totalorder %s44, 1
      %p193 = por %p191, %p192
      %p194 = scmp.ne.s32.totalorder %s185, %s186
      %p195 = scmp.eq.s32.totalorder %s44, 0
      %p196 = por %p194, %p195
      %p197 = scmp.ne.s32.totalorder %s185, %s186
      %p198 = scmp.eq.s32.totalorder %s45, 1
      %p199 = por %p197, %p198
      %p201 = scmp.ne.s32.totalorder %s186, %s200
      %p202 = scmp.eq.s32.totalorder %s45, 0
      %p203 = por %p201, %p202
      %s205 = sadd.s32 %s204, 1
      %p208 = scmp.eq.s32.totalorder %s39, 1
      %p209 = scmp.ne.s32.totalorder %s204, %s206
      %p210 = scmp.eq.s32.totalorder %s39, 0
      %p211 = por %p209, %p210
      %p212 = scmp.ne.s32.totalorder %s204, %s206
      %p213 = scmp.eq.s32.totalorder %s44, 1
      %p214 = por %p212, %p213
      %p215 = scmp.ne.s32.totalorder %s206, %s207
      %p216 = scmp.eq.s32.totalorder %s44, 0
      %p217 = por %p215, %p216
      %p218 = scmp.ne.s32.totalorder %s206, %s207
      %p219 = scmp.eq.s32.totalorder %s45, 1
      %p220 = por %p218, %p219
      %p222 = scmp.ne.s32.totalorder %s207, %s221
      %p223 = scmp.eq.s32.totalorder %s45, 0
      %p224 = por %p222, %p223
      %s226 = sadd.s32 %s225, 1
      %p229 = scmp.eq.s32.totalorder %s39, 1
      %p230 = scmp.ne.s32.totalorder %s225, %s227
      %p231 = scmp.eq.s32.totalorder %s39, 0
      %p232 = por %p230, %p231
      %p233 = scmp.ne.s32.totalorder %s225, %s227
      %p234 = scmp.eq.s32.totalorder %s44, 1
      %p235 = por %p233, %p234
      %p236 = scmp.ne.s32.totalorder %s227, %s228
      %p237 = scmp.eq.s32.totalorder %s44, 0
      %p238 = por %p236, %p237
      %p239 = scmp.ne.s32.totalorder %s227, %s228
      %p240 = scmp.eq.s32.totalorder %s45, 1
      %p241 = por %p239, %p240
      %p243 = scmp.ne.s32.totalorder %s228, %s242
      %p244 = scmp.eq.s32.totalorder %s45, 0
      %p245 = por %p243, %p244
      %s247 = sadd.s32 %s246, 1
      %p250 = scmp.eq.s32.totalorder %s39, 1
      %p251 = scmp.ne.s32.totalorder %s246, %s248
      %p252 = scmp.eq.s32.totalorder %s39, 0
      %p253 = por %p251, %p252
      %p254 = scmp.ne.s32.totalorder %s246, %s248
      %p255 = scmp.eq.s32.totalorder %s44, 1
      %p256 = por %p254, %p255
      %p257 = scmp.ne.s32.totalorder %s248, %s249
      %p258 = scmp.eq.s32.totalorder %s44, 0
      %p259 = por %p257, %p258
      %p260 = scmp.ne.s32.totalorder %s248, %s249
      %p261 = scmp.eq.s32.totalorder %s45, 1
      %p262 = por %p260, %p261
      %p264 = scmp.ne.s32.totalorder %s249, %s263
      %p265 = scmp.eq.s32.totalorder %s45, 0
      %p266 = por %p264, %p265
      %s268 = sadd.s32 %s267, 1
      %p271 = scmp.eq.s32.totalorder %s39, 1
      %p272 = scmp.ne.s32.totalorder %s267, %s269
      %p273 = scmp.eq.s32.totalorder %s39, 0
      %p274 = por %p272, %p273
      %p275 = scmp.ne.s32.totalorder %s267, %s269
      %p276 = scmp.eq.s32.totalorder %s44, 1
      %p277 = por %p275, %p276
      %p278 = scmp.ne.s32.totalorder %s269, %s270
      %p279 = scmp.eq.s32.totalorder %s44, 0
      %p280 = por %p278, %p279
      %p281 = scmp.ne.s32.totalorder %s269, %s270
      %p282 = scmp.eq.s32.totalorder %s45, 1
      %p283 = por %p281, %p282
      %p285 = scmp.ne.s32.totalorder %s270, %s284
      %p286 = scmp.eq.s32.totalorder %s45, 0
      %p287 = por %p285, %p286
      %s289 = sadd.s32 %s288, 1
      %p292 = scmp.eq.s32.totalorder %s39, 1
      %p293 = scmp.ne.s32.totalorder %s288, %s290
      %p294 = scmp.eq.s32.totalorder %s39, 0
      %p295 = por %p293, %p294
      %p296 = scmp.ne.s32.totalorder %s288, %s290
      %p297 = scmp.eq.s32.totalorder %s44, 1
      %p298 = por %p296, %p297
      %p299 = scmp.ne.s32.totalorder %s290, %s291
      %p300 = scmp.eq.s32.totalorder %s44, 0
      %p301 = por %p299, %p300
      %p302 = scmp.ne.s32.totalorder %s290, %s291
      %p303 = scmp.eq.s32.totalorder %s45, 1
      %p304 = por %p302, %p303
      %p306 = scmp.ne.s32.totalorder %s291, %s305
      %p307 = scmp.eq.s32.totalorder %s45, 0
      %p308 = por %p306, %p307
      %s310 = sadd.s32 %s309, 1
      %p313 = scmp.eq.s32.totalorder %s39, 1
      %p314 = scmp.ne.s32.totalorder %s309, %s311
      %p315 = scmp.eq.s32.totalorder %s39, 0
      %p316 = por %p314, %p315
      %p317 = scmp.ne.s32.totalorder %s309, %s311
      %p318 = scmp.eq.s32.totalorder %s44, 1
      %p319 = por %p317, %p318
      %p320 = scmp.ne.s32.totalorder %s311, %s312
      %p321 = scmp.eq.s32.totalorder %s44, 0
      %p322 = por %p320, %p321
      %p323 = scmp.ne.s32.totalorder %s311, %s312
      %p324 = scmp.eq.s32.totalorder %s45, 1
      %p325 = por %p323, %p324
      %p327 = scmp.ne.s32.totalorder %s312, %s326
      %p328 = scmp.eq.s32.totalorder %s45, 0
      %p329 = por %p327, %p328
      %s331 = sadd.s32 %s330, 1
      %p334 = scmp.eq.s32.totalorder %s39, 1
      %p335 = scmp.ne.s32.totalorder %s330, %s332
      %p336 = scmp.eq.s32.totalorder %s39, 0
      %p337 = por %p335, %p336
      %p338 = scmp.ne.s32.totalorder %s330, %s332
      %p339 = scmp.eq.s32.totalorder %s44, 1
      %p340 = por %p338, %p339
      %p341 = scmp.ne.s32.totalorder %s332, %s333
      %p342 = scmp.eq.s32.totalorder %s44, 0
      %p343 = por %p341, %p342
      %p344 = scmp.ne.s32.totalorder %s332, %s333
      %p345 = scmp.eq.s32.totalorder %s45, 1
      %p346 = por %p344, %p345
      %p348 = scmp.ne.s32.totalorder %s333, %s347
      %p349 = scmp.eq.s32.totalorder %s45, 0
      %p350 = por %p348, %p349
      %s352 = sadd.s32 %s351, 1
      %p355 = scmp.eq.s32.totalorder %s39, 1
      %p356 = scmp.ne.s32.totalorder %s351, %s353
      %p357 = scmp.eq.s32.totalorder %s39, 0
      %p358 = por %p356, %p357
      %p359 = scmp.ne.s32.totalorder %s351, %s353
      %p360 = scmp.eq.s32.totalorder %s44, 1
      %p361 = por %p359, %p360
      %p362 = scmp.ne.s32.totalorder %s353, %s354
      %p363 = scmp.eq.s32.totalorder %s44, 0
      %p364 = por %p362, %p363
      %p365 = scmp.ne.s32.totalorder %s353, %s354
      %p366 = scmp.eq.s32.totalorder %s45, 1
      %p367 = por %p365, %p366
      %p369 = scmp.ne.s32.totalorder %s354, %s368
      %p370 = scmp.eq.s32.totalorder %s45, 0
      %p371 = por %p369, %p370
      %s373 = sadd.s32 %s372, 1
      %p376 = scmp.eq.s32.totalorder %s39, 1
      %p377 = scmp.ne.s32.totalorder %s372, %s374
      %p378 = scmp.eq.s32.totalorder %s39, 0
      %p379 = por %p377, %p378
      %p380 = scmp.ne.s32.totalorder %s372, %s374
      %p381 = scmp.eq.s32.totalorder %s44, 1
      %p382 = por %p380, %p381
      %p383 = scmp.ne.s32.totalorder %s374, %s375
      %p384 = scmp.eq.s32.totalorder %s44, 0
      %p385 = por %p383, %p384
      %p386 = scmp.ne.s32.totalorder %s374, %s375
      %p387 = scmp.eq.s32.totalorder %s45, 1
      %p388 = por %p386, %p387
      %p390 = scmp.ne.s32.totalorder %s375, %s389
      %p391 = scmp.eq.s32.totalorder %s45, 0
      %p392 = por %p390, %p391
      %s394 = sadd.s32 %s393, 1
      %p397 = scmp.eq.s32.totalorder %s39, 1
      %p398 = scmp.ne.s32.totalorder %s393, %s395
      %p399 = scmp.eq.s32.totalorder %s39, 0
      %p400 = por %p398, %p399
      %p401 = scmp.ne.s32.totalorder %s393, %s395
      %p402 = scmp.eq.s32.totalorder %s44, 1
      %p403 = por %p401, %p402
      %p404 = scmp.ne.s32.totalorder %s395, %s396
      %p405 = scmp.eq.s32.totalorder %s44, 0
      %p406 = por %p404, %p405
      %p407 = scmp.ne.s32.totalorder %s395, %s396
      %p408 = scmp.eq.s32.totalorder %s45, 1
      %p409 = por %p407, %p408
      %p411 = scmp.ne.s32.totalorder %s396, %s410
      %p412 = scmp.eq.s32.totalorder %s45, 0
      %p413 = por %p411, %p412
      %s415 = sadd.s32 %s414, 1
      %p418 = scmp.eq.s32.totalorder %s39, 1
      %p419 = scmp.ne.s32.totalorder %s414, %s416
      %p420 = scmp.eq.s32.totalorder %s39, 0
      %p421 = por %p419, %p420
      %p422 = scmp.ne.s32.totalorder %s414, %s416
      %p423 = scmp.eq.s32.totalorder %s44, 1
      %p424 = por %p422, %p423
      %p425 = scmp.ne.s32.totalorder %s416, %s417
      %p426 = scmp.eq.s32.totalorder %s44, 0
      %p427 = por %p425, %p426
      %p428 = scmp.ne.s32.totalorder %s416, %s417
      %p429 = scmp.eq.s32.totalorder %s45, 1
      %p430 = por %p428, %p429
      %p432 = scmp.ne.s32.totalorder %s417, %s431
      %p433 = scmp.eq.s32.totalorder %s45, 0
      %p434 = por %p432, %p433
      %s436 = sadd.s32 %s435, 1
      %p439 = scmp.eq.s32.totalorder %s39, 1
      %p440 = scmp.ne.s32.totalorder %s435, %s437
      %p441 = scmp.eq.s32.totalorder %s39, 0
      %p442 = por %p440, %p441
      %p443 = scmp.ne.s32.totalorder %s435, %s437
      %p444 = scmp.eq.s32.totalorder %s44, 1
      %p445 = por %p443, %p444
      %p446 = scmp.ne.s32.totalorder %s437, %s438
      %p447 = scmp.eq.s32.totalorder %s44, 0
      %p448 = por %p446, %p447
      %p449 = scmp.ne.s32.totalorder %s437, %s438
      %p450 = scmp.eq.s32.totalorder %s45, 1
      %p451 = por %p449, %p450
      %p453 = scmp.ne.s32.totalorder %s438, %s452
      %p454 = scmp.eq.s32.totalorder %s45, 0
      %p455 = por %p453, %p454
      %s457 = sadd.s32 %s456, 1
      %p460 = scmp.eq.s32.totalorder %s39, 1
      %p461 = scmp.ne.s32.totalorder %s456, %s458
      %p462 = scmp.eq.s32.totalorder %s39, 0
      %p463 = por %p461, %p462
      %p464 = scmp.ne.s32.totalorder %s456, %s458
      %p465 = scmp.eq.s32.totalorder %s44, 1
      %p466 = por %p464, %p465
      %p467 = scmp.ne.s32.totalorder %s458, %s459
      %p468 = scmp.eq.s32.totalorder %s44, 0
      %p469 = por %p467, %p468
      %p470 = scmp.ne.s32.totalorder %s458, %s459
      %p471 = scmp.eq.s32.totalorder %s45, 1
      %p472 = por %p470, %p471
      %p474 = scmp.ne.s32.totalorder %s459, %s473
      %p475 = scmp.eq.s32.totalorder %s45, 0
      %p476 = por %p474, %p475
      %s478 = sadd.s32 %s477, 1
      %p481 = scmp.eq.s32.totalorder %s39, 1
      %p482 = scmp.ne.s32.totalorder %s477, %s479
      %p483 = scmp.eq.s32.totalorder %s39, 0
      %p484 = por %p482, %p483
      %p485 = scmp.ne.s32.totalorder %s477, %s479
      %p486 = scmp.eq.s32.totalorder %s44, 1
      %p487 = por %p485, %p486
      %p488 = scmp.ne.s32.totalorder %s479, %s480
      %p489 = scmp.eq.s32.totalorder %s44, 0
      %p490 = por %p488, %p489
      %p491 = scmp.ne.s32.totalorder %s479, %s480
      %p492 = scmp.eq.s32.totalorder %s45, 1
      %p493 = por %p491, %p492
      %p495 = scmp.ne.s32.totalorder %s480, %s494
      %p496 = scmp.eq.s32.totalorder %s45, 0
      %p497 = por %p495, %p496
      %s499 = sadd.s32 %s498, 1
      %p502 = scmp.eq.s32.totalorder %s39, 1
      %p503 = scmp.ne.s32.totalorder %s498, %s500
      %p504 = scmp.eq.s32.totalorder %s39, 0
      %p505 = por %p503, %p504
      %p506 = scmp.ne.s32.totalorder %s498, %s500
      %p507 = scmp.eq.s32.totalorder %s44, 1
      %p508 = por %p506, %p507
      %p509 = scmp.ne.s32.totalorder %s500, %s501
      %p510 = scmp.eq.s32.totalorder %s44, 0
      %p511 = por %p509, %p510
      %p512 = scmp.ne.s32.totalorder %s500, %s501
      %p513 = scmp.eq.s32.totalorder %s45, 1
      %p514 = por %p512, %p513
      %p516 = scmp.ne.s32.totalorder %s501, %s515
      %p517 = scmp.eq.s32.totalorder %s45, 0
      %p518 = por %p516, %p517
      %s519 = ssub.s32 %s39, %s46
      %p520 = scmp.eq.s32.totalorder %s519, 0
      %s522 = sadd.s32 %s521, 1
      %s523 = scalar_select %p520, %s521, %s522
      %p526 = pneg %p520
      %p527 = scmp.eq.s32.totalorder %s39, 1
      %p528 = por %p526, %p527
      %p529 = scmp.ne.s32.totalorder %s521, %s524
      %p530 = scmp.eq.s32.totalorder %s39, 0
      %p531 = por %p529, %p530
      %p532 = scmp.ne.s32.totalorder %s521, %s524
      %p533 = scmp.eq.s32.totalorder %s44, 1
      %p534 = por %p532, %p533
      %p535 = scmp.ne.s32.totalorder %s524, %s525
      %p536 = scmp.eq.s32.totalorder %s44, 0
      %p537 = por %p535, %p536
      %p538 = scmp.ne.s32.totalorder %s524, %s525
      %p539 = scmp.eq.s32.totalorder %s45, 1
      %p540 = por %p538, %p539
      %p542 = scmp.ne.s32.totalorder %s525, %s541
      %p543 = scmp.eq.s32.totalorder %s45, 0
      %p544 = por %p542, %p543
      %p545 = scmp.le.s32.totalorder 1, %s39
      %p546 = scmp.lt.s32.totalorder %s39, 3
      %p547 = pnand %p545, %p546
      %p548 = pneg %p547
      // Predicated region
      $region9: #{tpu_custom_call.1} parent=5 // pred_check
        _
      $region10: #{tpu_custom_call.1} parent=5 // pred_check_branch
        %550 = sbr.rel (%p547) target = $region12
      $region11: #{tpu_custom_call.1} parent=5 // pred_region
        %s551 = ssub.s32 %s39, 1
        // Predicated region
        $region13: #{tpu_custom_call.1} parent=11 // pred_check
          %p552 = pneg %p112
        $region14: #{tpu_custom_call.1} parent=11 // pred_check_branch
          %554 = sbr.rel (%p552) target = $region16
        $region15: #{tpu_custom_call.1} parent=11 // pred_region
          %s556 = ssub.s32 128, 128
          %557 = vsyncadd [#allocation6], %s556
          %s559 = sshll.u32 [#allocation7], 4
          %s560 = int_to_ptr.vmem [resolvable:$true] %s559
          %562 = dma.hbm_to_vmem [thread:$0]  %s2, 128, %s560, [#allocation6]
        $region16: #{tpu_custom_call.1} parent=11 // pred_fallthru
          _
        // Predicated region
        $region17: #{tpu_custom_call.1} parent=11 // pred_check
          %p563 = pneg %p133
        $region18: #{tpu_custom_call.1} parent=11 // pred_check_branch
          %565 = sbr.rel (%p563) target = $region20
        $region19: #{tpu_custom_call.1} parent=11 // pred_region
          %s567 = ssub.s32 128, 128
          %568 = vsyncadd [#allocation9], %s567
          %s570 = sshll.u32 [#allocation8], 4
          %s571 = int_to_ptr.vmem [resolvable:$true] %s570
          %573 = dma.hbm_to_vmem [thread:$0]  %s3, 128, %s571, [#allocation9]
        $region20: #{tpu_custom_call.1} parent=11 // pred_fallthru
          _
        // Predicated region
        $region21: #{tpu_custom_call.1} parent=11 // pred_check
          %p574 = pneg %p154
        $region22: #{tpu_custom_call.1} parent=11 // pred_check_branch
          %576 = sbr.rel (%p574) target = $region24
        $region23: #{tpu_custom_call.1} parent=11 // pred_region
          %s578 = ssub.s32 16, 16
          %579 = vsyncadd [#allocation9], %s578
          %s581 = sshll.u32 [#allocation10], 4
          %s582 = int_to_ptr.vmem [resolvable:$true] %s581
          %584 = dma.hbm_to_vmem [thread:$0]  %s4, 16, %s582, [#allocation9]
        $region24: #{tpu_custom_call.1} parent=11 // pred_fallthru
          _
        // Predicated region
        $region25: #{tpu_custom_call.1} parent=11 // pred_check
          %p585 = pneg %p175
        $region26: #{tpu_custom_call.1} parent=11 // pred_check_branch
          %587 = sbr.rel (%p585) target = $region28
        $region27: #{tpu_custom_call.1} parent=11 // pred_region
          _
        $region28: #{tpu_custom_call.1} parent=11 // pred_fallthru
          _
        // Predicated region
        $region29: #{tpu_custom_call.1} parent=11 // pred_check
          %p588 = pneg %p196
        $region30: #{tpu_custom_call.1} parent=11 // pred_check_branch
          %590 = sbr.rel (%p588) target = $region32
        $region31: #{tpu_custom_call.1} parent=11 // pred_region
          %s592 = ssub.s32 16, 16
          %593 = vsyncadd [#allocation12], %s592
          %s595 = sshll.u32 [#allocation11], 4
          %s596 = int_to_ptr.vmem [resolvable:$true] %s595
          %598 = dma.hbm_to_vmem [thread:$0]  %s6, 16, %s596, [#allocation12]
        $region32: #{tpu_custom_call.1} parent=11 // pred_fallthru
          _
        // Predicated region
        $region33: #{tpu_custom_call.1} parent=11 // pred_check
          %p599 = pneg %p217
        $region34: #{tpu_custom_call.1} parent=11 // pred_check_branch
          %601 = sbr.rel (%p599) target = $region36
        $region35: #{tpu_custom_call.1} parent=11 // pred_region
          _
        $region36: #{tpu_custom_call.1} parent=11 // pred_fallthru
          _
        // Predicated region
        $region37: #{tpu_custom_call.1} parent=11 // pred_check
          %p602 = pneg %p238
        $region38: #{tpu_custom_call.1} parent=11 // pred_check_branch
          %604 = sbr.rel (%p602) target = $region40
        $region39: #{tpu_custom_call.1} parent=11 // pred_region
          %s606 = ssub.s32 16, 16
          %607 = vsyncadd [#allocation12], %s606
          %s609 = sshll.u32 [#allocation13], 4
          %s610 = int_to_ptr.vmem [resolvable:$true] %s609
          %612 = dma.hbm_to_vmem [thread:$0]  %s8, 16, %s610, [#allocation12]
        $region40: #{tpu_custom_call.1} parent=11 // pred_fallthru
          _
        // Predicated region
        $region41: #{tpu_custom_call.1} parent=11 // pred_check
          %p613 = pneg %p259
        $region42: #{tpu_custom_call.1} parent=11 // pred_check_branch
          %615 = sbr.rel (%p613) target = $region44
        $region43: #{tpu_custom_call.1} parent=11 // pred_region
          _
        $region44: #{tpu_custom_call.1} parent=11 // pred_fallthru
          _
        // Predicated region
        $region45: #{tpu_custom_call.1} parent=11 // pred_check
          %p616 = pneg %p280
        $region46: #{tpu_custom_call.1} parent=11 // pred_check_branch
          %618 = sbr.rel (%p616) target = $region48
        $region47: #{tpu_custom_call.1} parent=11 // pred_region
          _
        $region48: #{tpu_custom_call.1} parent=11 // pred_fallthru
          _
        // Predicated region
        $region49: #{tpu_custom_call.1} parent=11 // pred_check
          %p619 = pneg %p301
        $region50: #{tpu_custom_call.1} parent=11 // pred_check_branch
          %621 = sbr.rel (%p619) target = $region52
        $region51: #{tpu_custom_call.1} parent=11 // pred_region
          _
        $region52: #{tpu_custom_call.1} parent=11 // pred_fallthru
          _
        // Predicated region
        $region53: #{tpu_custom_call.1} parent=11 // pred_check
          %p622 = pneg %p322
        $region54: #{tpu_custom_call.1} parent=11 // pred_check_branch
          %624 = sbr.rel (%p622) target = $region56
        $region55: #{tpu_custom_call.1} parent=11 // pred_region
          _
        $region56: #{tpu_custom_call.1} parent=11 // pred_fallthru
          _
        // Predicated region
        $region57: #{tpu_custom_call.1} parent=11 // pred_check
          %p625 = pneg %p343
        $region58: #{tpu_custom_call.1} parent=11 // pred_check_branch
          %627 = sbr.rel (%p625) target = $region60
        $region59: #{tpu_custom_call.1} parent=11 // pred_region
          _
        $region60: #{tpu_custom_call.1} parent=11 // pred_fallthru
          _
        // Predicated region
        $region61: #{tpu_custom_call.1} parent=11 // pred_check
          %p628 = pneg %p364
        $region62: #{tpu_custom_call.1} parent=11 // pred_check_branch
          %630 = sbr.rel (%p628) target = $region64
        $region63: #{tpu_custom_call.1} parent=11 // pred_region
          _
        $region64: #{tpu_custom_call.1} parent=11 // pred_fallthru
          _
        // Predicated region
        $region65: #{tpu_custom_call.1} parent=11 // pred_check
          %p631 = pneg %p385
        $region66: #{tpu_custom_call.1} parent=11 // pred_check_branch
          %633 = sbr.rel (%p631) target = $region68
        $region67: #{tpu_custom_call.1} parent=11 // pred_region
          _
        $region68: #{tpu_custom_call.1} parent=11 // pred_fallthru
          _
        // Predicated region
        $region69: #{tpu_custom_call.1} parent=11 // pred_check
          %p634 = pneg %p406
        $region70: #{tpu_custom_call.1} parent=11 // pred_check_branch
          %636 = sbr.rel (%p634) target = $region72
        $region71: #{tpu_custom_call.1} parent=11 // pred_region
          _
        $region72: #{tpu_custom_call.1} parent=11 // pred_fallthru
          _
        // Predicated region
        $region73: #{tpu_custom_call.1} parent=11 // pred_check
          %p637 = pneg %p427
        $region74: #{tpu_custom_call.1} parent=11 // pred_check_branch
          %639 = sbr.rel (%p637) target = $region76
        $region75: #{tpu_custom_call.1} parent=11 // pred_region
          _
        $region76: #{tpu_custom_call.1} parent=11 // pred_fallthru
          _
        // Predicated region
        $region77: #{tpu_custom_call.1} parent=11 // pred_check
          %p640 = pneg %p448
        $region78: #{tpu_custom_call.1} parent=11 // pred_check_branch
          %642 = sbr.rel (%p640) target = $region80
        $region79: #{tpu_custom_call.1} parent=11 // pred_region
          _
        $region80: #{tpu_custom_call.1} parent=11 // pred_fallthru
          _
        // Predicated region
        $region81: #{tpu_custom_call.1} parent=11 // pred_check
          %p643 = pneg %p469
        $region82: #{tpu_custom_call.1} parent=11 // pred_check_branch
          %645 = sbr.rel (%p643) target = $region84
        $region83: #{tpu_custom_call.1} parent=11 // pred_region
          _
        $region84: #{tpu_custom_call.1} parent=11 // pred_fallthru
          _
        // Predicated region
        $region85: #{tpu_custom_call.1} parent=11 // pred_check
          %p646 = pneg %p490
        $region86: #{tpu_custom_call.1} parent=11 // pred_check_branch
          %648 = sbr.rel (%p646) target = $region88
        $region87: #{tpu_custom_call.1} parent=11 // pred_region
          _
        $region88: #{tpu_custom_call.1} parent=11 // pred_fallthru
          _
        // Predicated region
        $region89: #{tpu_custom_call.1} parent=11 // pred_check
          %p649 = pneg %p511
        $region90: #{tpu_custom_call.1} parent=11 // pred_check_branch
          %651 = sbr.rel (%p649) target = $region92
        $region91: #{tpu_custom_call.1} parent=11 // pred_region
          _
        $region92: #{tpu_custom_call.1} parent=11 // pred_fallthru
          _
      $region12: #{tpu_custom_call.1} parent=5 // pred_fallthru
        _
      %p652 = scmp.lt.s32.totalorder %s39, 2
      // Predicated region
      $region93: #{tpu_custom_call.1} parent=5 // pred_check
        %p653 = pneg %p652
      $region94: #{tpu_custom_call.1} parent=5 // pred_check_branch
        %655 = sbr.rel (%p653) target = $region96
      $region95: #{tpu_custom_call.1} parent=5 // pred_region
        // Predicated region
        $region97: #{tpu_custom_call.1} parent=95 // pred_check
          %p656 = pneg %p59
        $region98: #{tpu_custom_call.1} parent=95 // pred_check_branch
          %658 = sbr.rel (%p656) target = $region100
        $region99: #{tpu_custom_call.1} parent=95 // pred_region
          %s659 = sand.u32 %s49, 1
          %s660 = scalar_lea.sflag [#allocation3], %s659
          %s661 = sand.u32 %s49, 1
          %s662 = smul.addr %s661, 8
          %s663 = scalar_lea.vmem [#allocation2], %s662
          %s665 = ssub.s32 128, 128
          %666 = vsyncadd %s660, %s665
          %s667 = smul.addr %s39, 128
          %s668 = scalar_lea.hbm %s0, %s667
          %s670 = sshll.u32 %s663, 4
          %s671 = int_to_ptr.vmem [resolvable:$true] %s670
          %673 = dma.hbm_to_vmem [thread:$0]  %s668, 128, %s671, %s660
        $region100: #{tpu_custom_call.1} parent=95 // pred_fallthru
          _
        // Predicated region
        $region101: #{tpu_custom_call.1} parent=95 // pred_check
          %p674 = pneg %p85
        $region102: #{tpu_custom_call.1} parent=95 // pred_check_branch
          %676 = sbr.rel (%p674) target = $region104
        $region103: #{tpu_custom_call.1} parent=95 // pred_region
          %s677 = sand.u32 %s39, 1
          %s678 = scalar_lea.sflag [#allocation6], %s677
          %s679 = sand.u32 %s75, 1
          %s680 = scalar_lea.vmem [#allocation5], %s679
          %s682 = ssub.s32 16, 16
          %683 = vsyncadd %s678, %s682
          %s684 = smul.addr %s39, 16
          %s685 = scalar_lea.hbm %s1, %s684
          %s687 = sshll.u32 %s680, 4
          %s688 = int_to_ptr.vmem [resolvable:$true] %s687
          %690 = dma.hbm_to_vmem [thread:$0]  %s685, 16, %s688, %s678
        $region104: #{tpu_custom_call.1} parent=95 // pred_fallthru
          _
      $region96: #{tpu_custom_call.1} parent=5 // pred_fallthru
        _
      %p691 = scmp.le.s32.totalorder 1, %s39
      %p692 = scmp.lt.s32.totalorder %s39, 3
      %p693 = pnand %p691, %p692
      %p694 = pneg %p693
      // Predicated region
      $region105: #{tpu_custom_call.1} parent=5 // pred_check
        _
      $region106: #{tpu_custom_call.1} parent=5 // pred_check_branch
        %696 = sbr.rel (%p693) target = $region108
      $region107: #{tpu_custom_call.1} parent=5 // pred_region
        %s697 = ssub.s32 %s39, 1
        %s698 = sand.u32 %s52, 1
        %s699 = scalar_lea.sflag [#allocation3], %s698
        %s700 = sand.u32 %s52, 1
        %s701 = smul.addr %s700, 8
        %s702 = scalar_lea.vmem [#allocation2], %s701
        // Predicated region
        $region109: #{tpu_custom_call.1} parent=107 // pred_check
          %p703 = pneg %p65
        $region110: #{tpu_custom_call.1} parent=107 // pred_check_branch
          %705 = sbr.rel (%p703) target = $region112
        $region111: #{tpu_custom_call.1} parent=107 // pred_region
          %706 = dma.done %s699, 128
        $region112: #{tpu_custom_call.1} parent=107 // pred_fallthru
          _
        %s707 = sand.u32 %s44, 1
        %s708 = scalar_lea.sflag [#allocation6], %s707
        %s709 = sand.u32 %s78, 1
        %s710 = scalar_lea.vmem [#allocation5], %s709
        // Predicated region
        $region113: #{tpu_custom_call.1} parent=107 // pred_check
          %p711 = pneg %p91
        $region114: #{tpu_custom_call.1} parent=107 // pred_check_branch
          %713 = sbr.rel (%p711) target = $region116
        $region115: #{tpu_custom_call.1} parent=107 // pred_region
          %714 = dma.done %s708, 16
        $region116: #{tpu_custom_call.1} parent=107 // pred_fallthru
          _
        // Predicated region
        $region117: #{tpu_custom_call.1} parent=107 // pred_check
          %p715 = pneg %p112
        $region118: #{tpu_custom_call.1} parent=107 // pred_check_branch
          %717 = sbr.rel (%p715) target = $region120
        $region119: #{tpu_custom_call.1} parent=107 // pred_region
          %718 = dma.done [#allocation6], 128
        $region120: #{tpu_custom_call.1} parent=107 // pred_fallthru
          _
        // Predicated region
        $region121: #{tpu_custom_call.1} parent=107 // pred_check
          %p719 = pneg %p133
        $region122: #{tpu_custom_call.1} parent=107 // pred_check_branch
          %721 = sbr.rel (%p719) target = $region124
        $region123: #{tpu_custom_call.1} parent=107 // pred_region
          %722 = dma.done [#allocation9], 128
        $region124: #{tpu_custom_call.1} parent=107 // pred_fallthru
          _
        // Predicated region
        $region125: #{tpu_custom_call.1} parent=107 // pred_check
          %p723 = pneg %p154
        $region126: #{tpu_custom_call.1} parent=107 // pred_check_branch
          %725 = sbr.rel (%p723) target = $region128
        $region127: #{tpu_custom_call.1} parent=107 // pred_region
          %726 = dma.done [#allocation9], 16
        $region128: #{tpu_custom_call.1} parent=107 // pred_fallthru
          _
        // Predicated region
        $region129: #{tpu_custom_call.1} parent=107 // pred_check
          %p727 = pneg %p196
        $region130: #{tpu_custom_call.1} parent=107 // pred_check_branch
          %729 = sbr.rel (%p727) target = $region132
        $region131: #{tpu_custom_call.1} parent=107 // pred_region
          %730 = dma.done [#allocation12], 16
        $region132: #{tpu_custom_call.1} parent=107 // pred_fallthru
          _
        // Predicated region
        $region133: #{tpu_custom_call.1} parent=107 // pred_check
          %p731 = pneg %p238
        $region134: #{tpu_custom_call.1} parent=107 // pred_check_branch
          %733 = sbr.rel (%p731) target = $region136
        $region135: #{tpu_custom_call.1} parent=107 // pred_region
          %734 = dma.done [#allocation12], 16
        $region136: #{tpu_custom_call.1} parent=107 // pred_fallthru
          _
        %s735 = sand.u32 %s52, 1
        %s736 = scalar_lea.sflag [#allocation3], %s735
        %s737 = sand.u32 %s52, 1
        %s738 = smul.addr %s737, 8
        %s739 = scalar_lea.vmem [#allocation2], %s738
        %p740 = pneg %p65
        %p741 = pneg %p62
        %s742 = sand.u32 %s44, 1
        %s743 = scalar_lea.sflag [#allocation6], %s742
        %s744 = sand.u32 %s78, 1
        %s745 = scalar_lea.vmem [#allocation5], %s744
        %p746 = pneg %p91
        %p747 = pneg %p88
        %p748 = pneg %p112
        %p749 = pneg %p109
        %p750 = pneg %p133
        %p751 = pneg %p130
        %p752 = pneg %p154
        %p753 = pneg %p151
        %p754 = pneg %p175
        %p755 = pneg %p172
        %p756 = pneg %p196
        %p757 = pneg %p193
        %p758 = pneg %p217
        %p759 = pneg %p214
        %p760 = pneg %p238
        %p761 = pneg %p235
        %p762 = pneg %p259
        %p763 = pneg %p256
        %p764 = pneg %p280
        %p765 = pneg %p277
        %p766 = pneg %p301
        %p767 = pneg %p298
        %p768 = pneg %p322
        %p769 = pneg %p319
        %p770 = pneg %p343
        %p771 = pneg %p340
        %p772 = pneg %p364
        %p773 = pneg %p361
        %p774 = pneg %p385
        %p775 = pneg %p382
        %p776 = pneg %p406
        %p777 = pneg %p403
        %p778 = pneg %p427
        %p779 = pneg %p424
        %p780 = pneg %p448
        %p781 = pneg %p445
        %p782 = pneg %p469
        %p783 = pneg %p466
        %p784 = pneg %p490
        %p785 = pneg %p487
        %p786 = pneg %p511
        %p787 = pneg %p508
        %p788 = pneg %p537
        %p789 = pneg %p534
        %s790 = sand.u32 %s524, 1
        %s791 = scalar_lea.sflag [#allocation4], %s790
        %s792 = sand.u32 %s524, 1
        %s793 = smul.addr %s792, 8
        %s794 = scalar_lea.vmem [#allocation14], %s793
        %v796 = vld [vmem:[%s702] sm:$0xff]
        %v797 = vld [vmem:[%s710] sm:$0x1]
        %v798 = vld [vmem:[#allocation7] sm:$0xff]
        %v799 = vld [vmem:[#allocation8] sm:$0xff]
        %v800 = vld [vmem:[#allocation10] sm:$0x1]
        %v801 = vmul.f32 %v796, %v796
        %vm802 = vcmask 261120
        %v803 = vsel %vm802, %v801, 0.0
        %804 = vadd.xlane.f32.xlu0 %v803
        %v805 = vpop.xlane.xlu0 %804
        %v806 = vrcp.pop 32.0
        %v807 = vmul.f32 %v805, %v806
        %v808 = vadd.f32 %v807, 1e-06
        %v809 = vrsqrt.pop %v808
        %v810 = vmul.f32 %v796, %v809
        %v812 = vlaneseq
        %v813 = vshrl.u32 %v812, 7
        %v814 = vsub.s32 0, %v813
        %v815 = vrot.slane %v800, %v814
        %v817 = vmul.f32 %v810, %v815
        %v818 = vpack.c.bf16 %v817, %v817
        %v819 = vld [vmem:[%s5] sm:$0xf]
        %v820 = vld [vmem:[%s5 + $0x4] sm:$0xf]
        %v821 = vld [vmem:[%s5 + $0x8] sm:$0xf]
        %v822 = vld [vmem:[%s5 + $0xc] sm:$0xf]
        %v823 = vld [vmem:[#allocation11] sm:$0x1]
        %v825 = vlaneseq
        %v826 = vshrl.u32 %v825, 7
        %v827 = vsub.s32 0, %v826
        %v828 = vrot.slane %v823, %v827
        %v834 = vunpack.c.l.b16 %v819
        %v835 = vunpack.c.l.b16 %v820
        %v836 = vunpack.c.l.b16 %v821
        %v837 = vunpack.c.l.b16 %v822
        %v838 = vpack.c.b16 %v835, %v834
        %v839 = vpack.c.b16 %v837, %v836
        %v843 = vsel %vm802, %v818, 0
        %845 = vmatprep.subr.bf16.mxu0 0
        %846 = vmatpush1.bf16.msra.mxu0 0
        %847 = vmatprep.subr.bf16.mxu0 0
        %848 = vmatpush1.bf16.msra.mxu0 0
        %849 = vmatprep.subr.bf16.mxu0 0
        %850 = vmatpush1.bf16.msra.mxu0 0
        %851 = vmatprep.subr.bf16.mxu0 0
        %852 = vmatpush1.bf16.msra.mxu0 0
        %853 = vmatprep.subr.bf16.mxu0 0
        %854 = vmatpush1.bf16.msra.mxu0 0
        %855 = vmatprep.subr.bf16.mxu0 0
        %856 = vmatpush1.bf16.msra.mxu0 0
        %857 = vmatprep.subr.bf16.mxu0 0
        %858 = vmatpush1.bf16.msra.mxu0 %v839
        %859 = vmatprep.subr.bf16.mxu0 0
        %860 = vmatpush1.bf16.msra.mxu0 %v838
        %861 = vmatprep.subr.bf16.mxu0 0
        %862 = vmatpush2.bf16.msra.mxu0 0
        %863 = vmatprep.subr.bf16.mxu0 0
        %864 = vmatpush2.bf16.msra.mxu0 0
        %865 = vmatprep.subr.bf16.mxu0 0
        %866 = vmatpush2.bf16.msra.mxu0 0
        %867 = vmatprep.subr.bf16.mxu0 0
        %868 = vmatpush2.bf16.msra.mxu0 0
        %869 = vmatprep.subr.bf16.mxu0 0
        %870 = vmatpush2.bf16.msra.mxu0 0
        %871 = vmatprep.subr.bf16.mxu0 0
        %872 = vmatpush2.bf16.msra.mxu0 0
        %873 = vmatprep.subr.bf16.mxu0 0
        %874 = vmatpush2.bf16.msra.mxu0 0
        %875 = vmatprep.subr.bf16.mxu0 0
        %876 = vmatpush2.bf16.msra.mxu0 0
        %877 = vmatprep.mubr.bf16.mxu0 0
        %878 = vmatmul.mubr.bf16.gmra.mxu0 %v843
        %v879 = vpop.f32.mrf.mxu0
        %v880 = vadd.f32 %v828, %v879
        %v881 = vpop.f32.mrf.mxu0
        %v882 = vpop.f32.mrf.mxu0
        %v883 = vpop.f32.mrf.mxu0
        %884 = vdwg.mxu0
        %v885 = vld [vmem:[%s7] sm:$0xf]
        %v886 = vld [vmem:[%s7 + $0x4] sm:$0xf]
        %v887 = vld [vmem:[%s7 + $0x8] sm:$0xf]
        %v888 = vld [vmem:[%s7 + $0xc] sm:$0xf]
        %v889 = vld [vmem:[#allocation13] sm:$0x1]
        %v891 = vlaneseq
        %v892 = vshrl.u32 %v891, 7
        %v893 = vsub.s32 0, %v892
        %v894 = vrot.slane %v889, %v893
        %v900 = vunpack.c.l.b16 %v885
        %v901 = vunpack.c.l.b16 %v886
        %v902 = vunpack.c.l.b16 %v887
        %v903 = vunpack.c.l.b16 %v888
        %v904 = vpack.c.b16 %v901, %v900
        %v905 = vpack.c.b16 %v903, %v902
        %908 = vmatprep.subr.bf16.mxu0 0
        %909 = vmatpush1.bf16.msra.mxu0 0
        %910 = vmatprep.subr.bf16.mxu0 0
        %911 = vmatpush1.bf16.msra.mxu0 0
        %912 = vmatprep.subr.bf16.mxu0 0
        %913 = vmatpush1.bf16.msra.mxu0 0
        %914 = vmatprep.subr.bf16.mxu0 0
        %915 = vmatpush1.bf16.msra.mxu0 0
        %916 = vmatprep.subr.bf16.mxu0 0
        %917 = vmatpush1.bf16.msra.mxu0 0
        %918 = vmatprep.subr.bf16.mxu0 0
        %919 = vmatpush1.bf16.msra.mxu0 0
        %920 = vmatprep.subr.bf16.mxu0 0
        %921 = vmatpush1.bf16.msra.mxu0 %v905
        %922 = vmatprep.subr.bf16.mxu0 0
        %923 = vmatpush1.bf16.msra.mxu0 %v904
        %924 = vmatprep.subr.bf16.mxu0 0
        %925 = vmatpush2.bf16.msra.mxu0 0
        %926 = vmatprep.subr.bf16.mxu0 0
        %927 = vmatpush2.bf16.msra.mxu0 0
        %928 = vmatprep.subr.bf16.mxu0 0
        %929 = vmatpush2.bf16.msra.mxu0 0
        %930 = vmatprep.subr.bf16.mxu0 0
        %931 = vmatpush2.bf16.msra.mxu0 0
        %932 = vmatprep.subr.bf16.mxu0 0
        %933 = vmatpush2.bf16.msra.mxu0 0
        %934 = vmatprep.subr.bf16.mxu0 0
        %935 = vmatpush2.bf16.msra.mxu0 0
        %936 = vmatprep.subr.bf16.mxu0 0
        %937 = vmatpush2.bf16.msra.mxu0 0
        %938 = vmatprep.subr.bf16.mxu0 0
        %939 = vmatpush2.bf16.msra.mxu0 0
        %940 = vmatprep.mubr.bf16.mxu0 0
        %941 = vmatmul.mubr.bf16.gmra.mxu0 %v843
        %v942 = vpop.f32.mrf.mxu0
        %v943 = vadd.f32 %v894, %v942
        %v944 = vpop.f32.mrf.mxu0
        %v945 = vpop.f32.mrf.mxu0
        %v946 = vpop.f32.mrf.mxu0
        %947 = vdwg.mxu0
        %v948 = vld [vmem:[%s9] sm:$0xf]
        %v949 = vld [vmem:[%s9 + $0x4] sm:$0xf]
        %v950 = vld [vmem:[%s9 + $0x8] sm:$0xf]
        %v951 = vld [vmem:[%s9 + $0xc] sm:$0xf]
        %v952 = vld [vmem:[%s10] sm:$0x1]
        %v954 = vlaneseq
        %v955 = vshrl.u32 %v954, 7
        %v956 = vsub.s32 0, %v955
        %v957 = vrot.slane %v952, %v956
        %v963 = vunpack.c.l.b16 %v948
        %v964 = vunpack.c.l.b16 %v949
        %v965 = vunpack.c.l.b16 %v950
        %v966 = vunpack.c.l.b16 %v951
        %v967 = vpack.c.b16 %v964, %v963
        %v968 = vpack.c.b16 %v966, %v965
        %971 = vmatprep.subr.bf16.mxu0 0
        %972 = vmatpush1.bf16.msra.mxu0 0
        %973 = vmatprep.subr.bf16.mxu0 0
        %974 = vmatpush1.bf16.msra.mxu0 0
        %975 = vmatprep.subr.bf16.mxu0 0
        %976 = vmatpush1.bf16.msra.mxu0 0
        %977 = vmatprep.subr.bf16.mxu0 0
        %978 = vmatpush1.bf16.msra.mxu0 0
        %979 = vmatprep.subr.bf16.mxu0 0
        %980 = vmatpush1.bf16.msra.mxu0 0
        %981 = vmatprep.subr.bf16.mxu0 0
        %982 = vmatpush1.bf16.msra.mxu0 0
        %983 = vmatprep.subr.bf16.mxu0 0
        %984 = vmatpush1.bf16.msra.mxu0 %v968
        %985 = vmatprep.subr.bf16.mxu0 0
        %986 = vmatpush1.bf16.msra.mxu0 %v967
        %987 = vmatprep.subr.bf16.mxu0 0
        %988 = vmatpush2.bf16.msra.mxu0 0
        %989 = vmatprep.subr.bf16.mxu0 0
        %990 = vmatpush2.bf16.msra.mxu0 0
        %991 = vmatprep.subr.bf16.mxu0 0
        %992 = vmatpush2.bf16.msra.mxu0 0
        %993 = vmatprep.subr.bf16.mxu0 0
        %994 = vmatpush2.bf16.msra.mxu0 0
        %995 = vmatprep.subr.bf16.mxu0 0
        %996 = vmatpush2.bf16.msra.mxu0 0
        %997 = vmatprep.subr.bf16.mxu0 0
        %998 = vmatpush2.bf16.msra.mxu0 0
        %999 = vmatprep.subr.bf16.mxu0 0
        %1000 = vmatpush2.bf16.msra.mxu0 0
        %1001 = vmatprep.subr.bf16.mxu0 0
        %1002 = vmatpush2.bf16.msra.mxu0 0
        %1003 = vmatprep.mubr.bf16.mxu0 0
        %1004 = vmatmul.mubr.bf16.gmra.mxu0 %v843
        %v1005 = vpop.f32.mrf.mxu0
        %v1006 = vadd.f32 %v957, %v1005
        %v1007 = vpop.f32.mrf.mxu0
        %v1008 = vpop.f32.mrf.mxu0
        %v1009 = vpop.f32.mrf.mxu0
        %1010 = vdwg.mxu0
        %v1011 = vld [vmem:[%s11] sm:$0xf]
        %v1012 = vld [vmem:[%s11 + $0x4] sm:$0xf]
        %v1013 = vld [vmem:[%s11 + $0x8] sm:$0xf]
        %v1014 = vld [vmem:[%s11 + $0xc] sm:$0xf]
        %v1015 = vld [vmem:[%s12] sm:$0x1]
        %v1017 = vlaneseq
        %v1018 = vshrl.u32 %v1017, 7
        %v1019 = vsub.s32 0, %v1018
        %v1020 = vrot.slane %v1015, %v1019
        %v1026 = vunpack.c.l.b16 %v1011
        %v1027 = vunpack.c.l.b16 %v1012
        %v1028 = vunpack.c.l.b16 %v1013
        %v1029 = vunpack.c.l.b16 %v1014
        %v1030 = vpack.c.b16 %v1027, %v1026
        %v1031 = vpack.c.b16 %v1029, %v1028
        %1034 = vmatprep.subr.bf16.mxu0 0
        %1035 = vmatpush1.bf16.msra.mxu0 0
        %1036 = vmatprep.subr.bf16.mxu0 0
        %1037 = vmatpush1.bf16.msra.mxu0 0
        %1038 = vmatprep.subr.bf16.mxu0 0
        %1039 = vmatpush1.bf16.msra.mxu0 0
        %1040 = vmatprep.subr.bf16.mxu0 0
        %1041 = vmatpush1.bf16.msra.mxu0 0
        %1042 = vmatprep.subr.bf16.mxu0 0
        %1043 = vmatpush1.bf16.msra.mxu0 0
        %1044 = vmatprep.subr.bf16.mxu0 0
        %1045 = vmatpush1.bf16.msra.mxu0 0
        %1046 = vmatprep.subr.bf16.mxu0 0
        %1047 = vmatpush1.bf16.msra.mxu0 %v1031
        %1048 = vmatprep.subr.bf16.mxu0 0
        %1049 = vmatpush1.bf16.msra.mxu0 %v1030
        %1050 = vmatprep.subr.bf16.mxu0 0
        %1051 = vmatpush2.bf16.msra.mxu0 0
        %1052 = vmatprep.subr.bf16.mxu0 0
        %1053 = vmatpush2.bf16.msra.mxu0 0
        %1054 = vmatprep.subr.bf16.mxu0 0
        %1055 = vmatpush2.bf16.msra.mxu0 0
        %1056 = vmatprep.subr.bf16.mxu0 0
        %1057 = vmatpush2.bf16.msra.mxu0 0
        %1058 = vmatprep.subr.bf16.mxu0 0
        %1059 = vmatpush2.bf16.msra.mxu0 0
        %1060 = vmatprep.subr.bf16.mxu0 0
        %1061 = vmatpush2.bf16.msra.mxu0 0
        %1062 = vmatprep.subr.bf16.mxu0 0
        %1063 = vmatpush2.bf16.msra.mxu0 0
        %1064 = vmatprep.subr.bf16.mxu0 0
        %1065 = vmatpush2.bf16.msra.mxu0 0
        %1066 = vmatprep.mubr.bf16.mxu0 0
        %1067 = vmatmul.mubr.bf16.gmra.mxu0 %v843
        %v1068 = vpop.f32.mrf.mxu0
        %v1069 = vadd.f32 %v1020, %v1068
        %v1070 = vpop.f32.mrf.mxu0
        %v1071 = vpop.f32.mrf.mxu0
        %v1072 = vpop.f32.mrf.mxu0
        %1073 = vdwg.mxu0
        %v1074 = vld [vmem:[%s13] sm:$0xf]
        %v1075 = vld [vmem:[%s13 + $0x4] sm:$0xf]
        %v1076 = vld [vmem:[%s13 + $0x8] sm:$0xf]
        %v1077 = vld [vmem:[%s13 + $0xc] sm:$0xf]
        %v1078 = vld [vmem:[%s14] sm:$0x1]
        %v1080 = vlaneseq
        %v1081 = vshrl.u32 %v1080, 7
        %v1082 = vsub.s32 0, %v1081
        %v1083 = vrot.slane %v1078, %v1082
        %v1089 = vunpack.c.l.b16 %v1074
        %v1090 = vunpack.c.l.b16 %v1075
        %v1091 = vunpack.c.l.b16 %v1076
        %v1092 = vunpack.c.l.b16 %v1077
        %v1093 = vpack.c.b16 %v1090, %v1089
        %v1094 = vpack.c.b16 %v1092, %v1091
        %1097 = vmatprep.subr.bf16.mxu0 0
        %1098 = vmatpush1.bf16.msra.mxu0 0
        %1099 = vmatprep.subr.bf16.mxu0 0
        %1100 = vmatpush1.bf16.msra.mxu0 0
        %1101 = vmatprep.subr.bf16.mxu0 0
        %1102 = vmatpush1.bf16.msra.mxu0 0
        %1103 = vmatprep.subr.bf16.mxu0 0
        %1104 = vmatpush1.bf16.msra.mxu0 0
        %1105 = vmatprep.subr.bf16.mxu0 0
        %1106 = vmatpush1.bf16.msra.mxu0 0
        %1107 = vmatprep.subr.bf16.mxu0 0
        %1108 = vmatpush1.bf16.msra.mxu0 0
        %1109 = vmatprep.subr.bf16.mxu0 0
        %1110 = vmatpush1.bf16.msra.mxu0 %v1094
        %1111 = vmatprep.subr.bf16.mxu0 0
        %1112 = vmatpush1.bf16.msra.mxu0 %v1093
        %1113 = vmatprep.subr.bf16.mxu0 0
        %1114 = vmatpush2.bf16.msra.mxu0 0
        %1115 = vmatprep.subr.bf16.mxu0 0
        %1116 = vmatpush2.bf16.msra.mxu0 0
        %1117 = vmatprep.subr.bf16.mxu0 0
        %1118 = vmatpush2.bf16.msra.mxu0 0
        %1119 = vmatprep.subr.bf16.mxu0 0
        %1120 = vmatpush2.bf16.msra.mxu0 0
        %1121 = vmatprep.subr.bf16.mxu0 0
        %1122 = vmatpush2.bf16.msra.mxu0 0
        %1123 = vmatprep.subr.bf16.mxu0 0
        %1124 = vmatpush2.bf16.msra.mxu0 0
        %1125 = vmatprep.subr.bf16.mxu0 0
        %1126 = vmatpush2.bf16.msra.mxu0 0
        %1127 = vmatprep.subr.bf16.mxu0 0
        %1128 = vmatpush2.bf16.msra.mxu0 0
        %1129 = vmatprep.mubr.bf16.mxu0 0
        %1130 = vmatmul.mubr.bf16.gmra.mxu0 %v843
        %v1131 = vpop.f32.mrf.mxu0
        %v1132 = vadd.f32 %v1083, %v1131
        %v1133 = vpop.f32.mrf.mxu0
        %v1134 = vpop.f32.mrf.mxu0
        %v1135 = vpop.f32.mrf.mxu0
        %1136 = vdwg.mxu0
        %v1137 = vpack.c.bf16 %v1132, %v1132
        %v1138 = vmul.f32 %v880, %v798
        %v1139 = vmul.f32 %v943, %v799
        %v1140 = vadd.f32 %v1138, %v1139
        %v1141 = vpack.c.bf16 %v1140, %v1140
        %v1142 = vmul.f32 %v1006, %v798
        %v1143 = vmul.f32 %v1069, %v799
        %v1144 = vadd.f32 %v1142, %v1143
        %v1145 = vpack.c.bf16 %v1144, %v1144
        %vm1146 = vcmask 64512
        %v1148 = vsel %vm1146, %v1141, 0
        %v1151 = vsel %vm1146, %v1145, 0
        %1153 = vmatprep.subr.bf16.mxu0 0
        %1154 = vmatpush1.bf16.xpose.msra.mxu0 0
        %1155 = vmatprep.subr.bf16.mxu0 0
        %1156 = vmatpush1.bf16.xpose.msra.mxu0 0
        %1157 = vmatprep.subr.bf16.mxu0 0
        %1158 = vmatpush1.bf16.xpose.msra.mxu0 0
        %1159 = vmatprep.subr.bf16.mxu0 0
        %1160 = vmatpush1.bf16.xpose.msra.mxu0 0
        %1161 = vmatprep.subr.bf16.mxu0 0
        %1162 = vmatpush1.bf16.xpose.msra.mxu0 0
        %1163 = vmatprep.subr.bf16.mxu0 0
        %1164 = vmatpush1.bf16.xpose.msra.mxu0 0
        %1165 = vmatprep.subr.bf16.mxu0 0
        %1166 = vmatpush1.bf16.xpose.msra.mxu0 0
        %1167 = vmatprep.subr.bf16.mxu0 0
        %1168 = vmatpush1.bf16.xpose.msra.mxu0 %v1151
        %1169 = vmatprep.subr.bf16.mxu0 0
        %1170 = vmatpush2.bf16.xpose.msra.mxu0 0
        %1171 = vmatprep.subr.bf16.mxu0 0
        %1172 = vmatpush2.bf16.xpose.msra.mxu0 0
        %1173 = vmatprep.subr.bf16.mxu0 0
        %1174 = vmatpush2.bf16.xpose.msra.mxu0 0
        %1175 = vmatprep.subr.bf16.mxu0 0
        %1176 = vmatpush2.bf16.xpose.msra.mxu0 0
        %1177 = vmatprep.subr.bf16.mxu0 0
        %1178 = vmatpush2.bf16.xpose.msra.mxu0 0
        %1179 = vmatprep.subr.bf16.mxu0 0
        %1180 = vmatpush2.bf16.xpose.msra.mxu0 0
        %1181 = vmatprep.subr.bf16.mxu0 0
        %1182 = vmatpush2.bf16.xpose.msra.mxu0 0
        %1183 = vmatprep.subr.bf16.mxu0 0
        %1184 = vmatpush2.bf16.xpose.msra.mxu0 0
        %1185 = vmatprep.mubr.bf16.mxu0 0
        %1186 = vmatmul.mubr.bf16.gmra.mxu0 %v1148
        %v1187 = vpop.f32.mrf.mxu0
        %v1188 = vadd.f32 0.0, %v1187
        %v1189 = vpop.f32.mrf.mxu0
        %v1190 = vpop.f32.mrf.mxu0
        %v1191 = vpop.f32.mrf.mxu0
        %1192 = vdwg.mxu0
        %v1193 = vmul.f32 %v1188, 0.35355338
        %v1195 = vlaneseq
        %v1196 = vshrl.u32 %v1195, 7
        %v1197 = vsub.s32 0, %v1196
        %v1198 = vrot.slane %v797, %v1197
        %v1200 = vadd.f32 %v1193, %v1198
        %v1201 = vsel %vm1146, %v1200, -inf
        %1202 = vmax.xlane.f32.xlu0 %v1201
        %v1203 = vpop.xlane.xlu0 %1202
        %v1204 = vsub.f32 %v1200, %v1203
        %v1205 = vmul.f32 %v1204, 1.442695
        %v1206 = vpow.pop %v1205
        %v1207 = vsel %vm1146, %v1206, 0.0
        %1208 = vadd.xlane.f32.xlu0 %v1207
        %v1209 = vpop.xlane.xlu0 %1208
        %v1210 = vrcp.pop %v1209
        %v1211 = vmul.f32 %v1206, %v1210
        %v1212 = vpack.c.bf16 %v1211, %v1211
        %v1214 = vsel %vm1146, %v1212, 0
        %vm1216 = vcmask 1043456
        %v1218 = vsel %vm1216, %v1137, 0
        %1220 = vmatprep.subr.bf16.mxu0 0
        %1221 = vmatpush1.bf16.msra.mxu0 0
        %1222 = vmatprep.subr.bf16.mxu0 0
        %1223 = vmatpush1.bf16.msra.mxu0 0
        %1224 = vmatprep.subr.bf16.mxu0 0
        %1225 = vmatpush1.bf16.msra.mxu0 0
        %1226 = vmatprep.subr.bf16.mxu0 0
        %1227 = vmatpush1.bf16.msra.mxu0 0
        %1228 = vmatprep.subr.bf16.mxu0 0
        %1229 = vmatpush1.bf16.msra.mxu0 0
        %1230 = vmatprep.subr.bf16.mxu0 0
        %1231 = vmatpush1.bf16.msra.mxu0 0
        %1232 = vmatprep.subr.bf16.mxu0 0
        %1233 = vmatpush1.bf16.msra.mxu0 0
        %1234 = vmatprep.subr.bf16.mxu0 0
        %1235 = vmatpush1.bf16.msra.mxu0 %v1218
        %1236 = vmatprep.subr.bf16.mxu0 0
        %1237 = vmatpush2.bf16.msra.mxu0 0
        %1238 = vmatprep.subr.bf16.mxu0 0
        %1239 = vmatpush2.bf16.msra.mxu0 0
        %1240 = vmatprep.subr.bf16.mxu0 0
        %1241 = vmatpush2.bf16.msra.mxu0 0
        %1242 = vmatprep.subr.bf16.mxu0 0
        %1243 = vmatpush2.bf16.msra.mxu0 0
        %1244 = vmatprep.subr.bf16.mxu0 0
        %1245 = vmatpush2.bf16.msra.mxu0 0
        %1246 = vmatprep.subr.bf16.mxu0 0
        %1247 = vmatpush2.bf16.msra.mxu0 0
        %1248 = vmatprep.subr.bf16.mxu0 0
        %1249 = vmatpush2.bf16.msra.mxu0 0
        %1250 = vmatprep.subr.bf16.mxu0 0
        %1251 = vmatpush2.bf16.msra.mxu0 0
        %1252 = vmatprep.mubr.bf16.mxu0 0
        %1253 = vmatmul.mubr.bf16.gmra.mxu0 %v1214
        %v1254 = vpop.f32.mrf.mxu0
        %v1255 = vadd.f32 0.0, %v1254
        %v1256 = vpop.f32.mrf.mxu0
        %v1257 = vpop.f32.mrf.mxu0
        %v1258 = vpop.f32.mrf.mxu0
        %1259 = vdwg.mxu0
        %1261 = vrot.lane.b32.xlu0 %v1141, 120
        %v1262 = vpop.permute.xlu0 %1261
        %1264 = vrot.lane.b32.xlu0 %v1145, 120
        %v1265 = vpop.permute.xlu0 %1264
        %v1267 = vsel %vm1146, %v1262, 0
        %v1270 = vsel %vm1146, %v1265, 0
        %1272 = vmatprep.subr.bf16.mxu0 0
        %1273 = vmatpush1.bf16.xpose.msra.mxu0 0
        %1274 = vmatprep.subr.bf16.mxu0 0
        %1275 = vmatpush1.bf16.xpose.msra.mxu0 0
        %1276 = vmatprep.subr.bf16.mxu0 0
        %1277 = vmatpush1.bf16.xpose.msra.mxu0 0
        %1278 = vmatprep.subr.bf16.mxu0 0
        %1279 = vmatpush1.bf16.xpose.msra.mxu0 0
        %1280 = vmatprep.subr.bf16.mxu0 0
        %1281 = vmatpush1.bf16.xpose.msra.mxu0 0
        %1282 = vmatprep.subr.bf16.mxu0 0
        %1283 = vmatpush1.bf16.xpose.msra.mxu0 0
        %1284 = vmatprep.subr.bf16.mxu0 0
        %1285 = vmatpush1.bf16.xpose.msra.mxu0 0
        %1286 = vmatprep.subr.bf16.mxu0 0
        %1287 = vmatpush1.bf16.xpose.msra.mxu0 %v1270
        %1288 = vmatprep.subr.bf16.mxu0 0
        %1289 = vmatpush2.bf16.xpose.msra.mxu0 0
        %1290 = vmatprep.subr.bf16.mxu0 0
        %1291 = vmatpush2.bf16.xpose.msra.mxu0 0
        %1292 = vmatprep.subr.bf16.mxu0 0
        %1293 = vmatpush2.bf16.xpose.msra.mxu0 0
        %1294 = vmatprep.subr.bf16.mxu0 0
        %1295 = vmatpush2.bf16.xpose.msra.mxu0 0
        %1296 = vmatprep.subr.bf16.mxu0 0
        %1297 = vmatpush2.bf16.xpose.msra.mxu0 0
        %1298 = vmatprep.subr.bf16.mxu0 0
        %1299 = vmatpush2.bf16.xpose.msra.mxu0 0
        %1300 = vmatprep.subr.bf16.mxu0 0
        %1301 = vmatpush2.bf16.xpose.msra.mxu0 0
        %1302 = vmatprep.subr.bf16.mxu0 0
        %1303 = vmatpush2.bf16.xpose.msra.mxu0 0
        %1304 = vmatprep.mubr.bf16.mxu0 0
        %1305 = vmatmul.mubr.bf16.gmra.mxu0 %v1267
        %v1306 = vpop.f32.mrf.mxu0
        %v1307 = vadd.f32 0.0, %v1306
        %v1308 = vpop.f32.mrf.mxu0
        %v1309 = vpop.f32.mrf.mxu0
        %v1310 = vpop.f32.mrf.mxu0
        %1311 = vdwg.mxu0
        %v1312 = vmul.f32 %v1307, 0.35355338
        %v1313 = vadd.f32 %v1312, %v1198
        %v1314 = vsel %vm1146, %v1313, -inf
        %1315 = vmax.xlane.f32.xlu0 %v1314
        %v1316 = vpop.xlane.xlu0 %1315
        %v1317 = vsub.f32 %v1313, %v1316
        %v1318 = vmul.f32 %v1317, 1.442695
        %v1319 = vpow.pop %v1318
        %v1320 = vsel %vm1146, %v1319, 0.0
        %1321 = vadd.xlane.f32.xlu0 %v1320
        %v1322 = vpop.xlane.xlu0 %1321
        %v1323 = vrcp.pop %v1322
        %v1324 = vmul.f32 %v1319, %v1323
        %v1325 = vpack.c.bf16 %v1324, %v1324
        %1327 = vrot.lane.b32.xlu0 %v1137, 120
        %v1328 = vpop.permute.xlu0 %1327
        %v1330 = vsel %vm1146, %v1325, 0
        %v1333 = vsel %vm1216, %v1328, 0
        %1335 = vmatprep.subr.bf16.mxu0 0
        %1336 = vmatpush1.bf16.msra.mxu0 0
        %1337 = vmatprep.subr.bf16.mxu0 0
        %1338 = vmatpush1.bf16.msra.mxu0 0
        %1339 = vmatprep.subr.bf16.mxu0 0
        %1340 = vmatpush1.bf16.msra.mxu0 0
        %1341 = vmatprep.subr.bf16.mxu0 0
        %1342 = vmatpush1.bf16.msra.mxu0 0
        %1343 = vmatprep.subr.bf16.mxu0 0
        %1344 = vmatpush1.bf16.msra.mxu0 0
        %1345 = vmatprep.subr.bf16.mxu0 0
        %1346 = vmatpush1.bf16.msra.mxu0 0
        %1347 = vmatprep.subr.bf16.mxu0 0
        %1348 = vmatpush1.bf16.msra.mxu0 0
        %1349 = vmatprep.subr.bf16.mxu0 0
        %1350 = vmatpush1.bf16.msra.mxu0 %v1333
        %1351 = vmatprep.subr.bf16.mxu0 0
        %1352 = vmatpush2.bf16.msra.mxu0 0
        %1353 = vmatprep.subr.bf16.mxu0 0
        %1354 = vmatpush2.bf16.msra.mxu0 0
        %1355 = vmatprep.subr.bf16.mxu0 0
        %1356 = vmatpush2.bf16.msra.mxu0 0
        %1357 = vmatprep.subr.bf16.mxu0 0
        %1358 = vmatpush2.bf16.msra.mxu0 0
        %1359 = vmatprep.subr.bf16.mxu0 0
        %1360 = vmatpush2.bf16.msra.mxu0 0
        %1361 = vmatprep.subr.bf16.mxu0 0
        %1362 = vmatpush2.bf16.msra.mxu0 0
        %1363 = vmatprep.subr.bf16.mxu0 0
        %1364 = vmatpush2.bf16.msra.mxu0 0
        %1365 = vmatprep.subr.bf16.mxu0 0
        %1366 = vmatpush2.bf16.msra.mxu0 0
        %1367 = vmatprep.mubr.bf16.mxu0 0
        %1368 = vmatmul.mubr.bf16.gmra.mxu0 %v1330
        %v1369 = vpop.f32.mrf.mxu0
        %v1370 = vadd.f32 0.0, %v1369
        %v1371 = vpop.f32.mrf.mxu0
        %v1372 = vpop.f32.mrf.mxu0
        %v1373 = vpop.f32.mrf.mxu0
        %1374 = vdwg.mxu0
        %1375 = vrot.lane.b32.xlu0 %v1141, 112
        %v1376 = vpop.permute.xlu0 %1375
        %1377 = vrot.lane.b32.xlu0 %v1145, 112
        %v1378 = vpop.permute.xlu0 %1377
        %v1380 = vsel %vm1146, %v1376, 0
        %v1383 = vsel %vm1146, %v1378, 0
        %1385 = vmatprep.subr.bf16.mxu0 0
        %1386 = vmatpush1.bf16.xpose.msra.mxu0 0
        %1387 = vmatprep.subr.bf16.mxu0 0
        %1388 = vmatpush1.bf16.xpose.msra.mxu0 0
        %1389 = vmatprep.subr.bf16.mxu0 0
        %1390 = vmatpush1.bf16.xpose.msra.mxu0 0
        %1391 = vmatprep.subr.bf16.mxu0 0
        %1392 = vmatpush1.bf16.xpose.msra.mxu0 0
        %1393 = vmatprep.subr.bf16.mxu0 0
        %1394 = vmatpush1.bf16.xpose.msra.mxu0 0
        %1395 = vmatprep.subr.bf16.mxu0 0
        %1396 = vmatpush1.bf16.xpose.msra.mxu0 0
        %1397 = vmatprep.subr.bf16.mxu0 0
        %1398 = vmatpush1.bf16.xpose.msra.mxu0 0
        %1399 = vmatprep.subr.bf16.mxu0 0
        %1400 = vmatpush1.bf16.xpose.msra.mxu0 %v1383
        %1401 = vmatprep.subr.bf16.mxu0 0
        %1402 = vmatpush2.bf16.xpose.msra.mxu0 0
        %1403 = vmatprep.subr.bf16.mxu0 0
        %1404 = vmatpush2.bf16.xpose.msra.mxu0 0
        %1405 = vmatprep.subr.bf16.mxu0 0
        %1406 = vmatpush2.bf16.xpose.msra.mxu0 0
        %1407 = vmatprep.subr.bf16.mxu0 0
        %1408 = vmatpush2.bf16.xpose.msra.mxu0 0
        %1409 = vmatprep.subr.bf16.mxu0 0
        %1410 = vmatpush2.bf16.xpose.msra.mxu0 0
        %1411 = vmatprep.subr.bf16.mxu0 0
        %1412 = vmatpush2.bf16.xpose.msra.mxu0 0
        %1413 = vmatprep.subr.bf16.mxu0 0
        %1414 = vmatpush2.bf16.xpose.msra.mxu0 0
        %1415 = vmatprep.subr.bf16.mxu0 0
        %1416 = vmatpush2.bf16.xpose.msra.mxu0 0
        %1417 = vmatprep.mubr.bf16.mxu0 0
        %1418 = vmatmul.mubr.bf16.gmra.mxu0 %v1380
        %v1419 = vpop.f32.mrf.mxu0
        %v1420 = vadd.f32 0.0, %v1419
        %v1421 = vpop.f32.mrf.mxu0
        %v1422 = vpop.f32.mrf.mxu0
        %v1423 = vpop.f32.mrf.mxu0
        %1424 = vdwg.mxu0
        %v1425 = vmul.f32 %v1420, 0.35355338
        %v1426 = vadd.f32 %v1425, %v1198
        %v1427 = vsel %vm1146, %v1426, -inf
        %1428 = vmax.xlane.f32.xlu0 %v1427
        %v1429 = vpop.xlane.xlu0 %1428
        %v1430 = vsub.f32 %v1426, %v1429
        %v1431 = vmul.f32 %v1430, 1.442695
        %v1432 = vpow.pop %v1431
        %v1433 = vsel %vm1146, %v1432, 0.0
        %1434 = vadd.xlane.f32.xlu0 %v1433
        %v1435 = vpop.xlane.xlu0 %1434
        %v1436 = vrcp.pop %v1435
        %v1437 = vmul.f32 %v1432, %v1436
        %v1438 = vpack.c.bf16 %v1437, %v1437
        %1439 = vrot.lane.b32.xlu0 %v1137, 112
        %v1440 = vpop.permute.xlu0 %1439
        %v1442 = vsel %vm1146, %v1438, 0
        %v1445 = vsel %vm1216, %v1440, 0
        %1447 = vmatprep.subr.bf16.mxu0 0
        %1448 = vmatpush1.bf16.msra.mxu0 0
        %1449 = vmatprep.subr.bf16.mxu0 0
        %1450 = vmatpush1.bf16.msra.mxu0 0
        %1451 = vmatprep.subr.bf16.mxu0 0
        %1452 = vmatpush1.bf16.msra.mxu0 0
        %1453 = vmatprep.subr.bf16.mxu0 0
        %1454 = vmatpush1.bf16.msra.mxu0 0
        %1455 = vmatprep.subr.bf16.mxu0 0
        %1456 = vmatpush1.bf16.msra.mxu0 0
        %1457 = vmatprep.subr.bf16.mxu0 0
        %1458 = vmatpush1.bf16.msra.mxu0 0
        %1459 = vmatprep.subr.bf16.mxu0 0
        %1460 = vmatpush1.bf16.msra.mxu0 0
        %1461 = vmatprep.subr.bf16.mxu0 0
        %1462 = vmatpush1.bf16.msra.mxu0 %v1445
        %1463 = vmatprep.subr.bf16.mxu0 0
        %1464 = vmatpush2.bf16.msra.mxu0 0
        %1465 = vmatprep.subr.bf16.mxu0 0
        %1466 = vmatpush2.bf16.msra.mxu0 0
        %1467 = vmatprep.subr.bf16.mxu0 0
        %1468 = vmatpush2.bf16.msra.mxu0 0
        %1469 = vmatprep.subr.bf16.mxu0 0
        %1470 = vmatpush2.bf16.msra.mxu0 0
        %1471 = vmatprep.subr.bf16.mxu0 0
        %1472 = vmatpush2.bf16.msra.mxu0 0
        %1473 = vmatprep.subr.bf16.mxu0 0
        %1474 = vmatpush2.bf16.msra.mxu0 0
        %1475 = vmatprep.subr.bf16.mxu0 0
        %1476 = vmatpush2.bf16.msra.mxu0 0
        %1477 = vmatprep.subr.bf16.mxu0 0
        %1478 = vmatpush2.bf16.msra.mxu0 0
        %1479 = vmatprep.mubr.bf16.mxu0 0
        %1480 = vmatmul.mubr.bf16.gmra.mxu0 %v1442
        %v1481 = vpop.f32.mrf.mxu0
        %v1482 = vadd.f32 0.0, %v1481
        %v1483 = vpop.f32.mrf.mxu0
        %v1484 = vpop.f32.mrf.mxu0
        %v1485 = vpop.f32.mrf.mxu0
        %1486 = vdwg.mxu0
        %1487 = vrot.lane.b32.xlu0 %v1141, 104
        %v1488 = vpop.permute.xlu0 %1487
        %1489 = vrot.lane.b32.xlu0 %v1145, 104
        %v1490 = vpop.permute.xlu0 %1489
        %v1492 = vsel %vm1146, %v1488, 0
        %v1495 = vsel %vm1146, %v1490, 0
        %1497 = vmatprep.subr.bf16.mxu0 0
        %1498 = vmatpush1.bf16.xpose.msra.mxu0 0
        %1499 = vmatprep.subr.bf16.mxu0 0
        %1500 = vmatpush1.bf16.xpose.msra.mxu0 0
        %1501 = vmatprep.subr.bf16.mxu0 0
        %1502 = vmatpush1.bf16.xpose.msra.mxu0 0
        %1503 = vmatprep.subr.bf16.mxu0 0
        %1504 = vmatpush1.bf16.xpose.msra.mxu0 0
        %1505 = vmatprep.subr.bf16.mxu0 0
        %1506 = vmatpush1.bf16.xpose.msra.mxu0 0
        %1507 = vmatprep.subr.bf16.mxu0 0
        %1508 = vmatpush1.bf16.xpose.msra.mxu0 0
        %1509 = vmatprep.subr.bf16.mxu0 0
        %1510 = vmatpush1.bf16.xpose.msra.mxu0 0
        %1511 = vmatprep.subr.bf16.mxu0 0
        %1512 = vmatpush1.bf16.xpose.msra.mxu0 %v1495
        %1513 = vmatprep.subr.bf16.mxu0 0
        %1514 = vmatpush2.bf16.xpose.msra.mxu0 0
        %1515 = vmatprep.subr.bf16.mxu0 0
        %1516 = vmatpush2.bf16.xpose.msra.mxu0 0
        %1517 = vmatprep.subr.bf16.mxu0 0
        %1518 = vmatpush2.bf16.xpose.msra.mxu0 0
        %1519 = vmatprep.subr.bf16.mxu0 0
        %1520 = vmatpush2.bf16.xpose.msra.mxu0 0
        %1521 = vmatprep.subr.bf16.mxu0 0
        %1522 = vmatpush2.bf16.xpose.msra.mxu0 0
        %1523 = vmatprep.subr.bf16.mxu0 0
        %1524 = vmatpush2.bf16.xpose.msra.mxu0 0
        %1525 = vmatprep.subr.bf16.mxu0 0
        %1526 = vmatpush2.bf16.xpose.msra.mxu0 0
        %1527 = vmatprep.subr.bf16.mxu0 0
        %1528 = vmatpush2.bf16.xpose.msra.mxu0 0
        %1529 = vmatprep.mubr.bf16.mxu0 0
        %1530 = vmatmul.mubr.bf16.gmra.mxu0 %v1492
        %v1531 = vpop.f32.mrf.mxu0
        %v1532 = vadd.f32 0.0, %v1531
        %v1533 = vpop.f32.mrf.mxu0
        %v1534 = vpop.f32.mrf.mxu0
        %v1535 = vpop.f32.mrf.mxu0
        %1536 = vdwg.mxu0
        %v1537 = vmul.f32 %v1532, 0.35355338
        %v1538 = vadd.f32 %v1537, %v1198
        %v1539 = vsel %vm1146, %v1538, -inf
        %1540 = vmax.xlane.f32.xlu0 %v1539
        %v1541 = vpop.xlane.xlu0 %1540
        %v1542 = vsub.f32 %v1538, %v1541
        %v1543 = vmul.f32 %v1542, 1.442695
        %v1544 = vpow.pop %v1543
        %v1545 = vsel %vm1146, %v1544, 0.0
        %1546 = vadd.xlane.f32.xlu0 %v1545
        %v1547 = vpop.xlane.xlu0 %1546
        %v1548 = vrcp.pop %v1547
        %v1549 = vmul.f32 %v1544, %v1548
        %v1550 = vpack.c.bf16 %v1549, %v1549
        %1551 = vrot.lane.b32.xlu0 %v1137, 104
        %v1552 = vpop.permute.xlu0 %1551
        %v1554 = vsel %vm1146, %v1550, 0
        %v1557 = vsel %vm1216, %v1552, 0
        %1559 = vmatprep.subr.bf16.mxu0 0
        %1560 = vmatpush1.bf16.msra.mxu0 0
        %1561 = vmatprep.subr.bf16.mxu0 0
        %1562 = vmatpush1.bf16.msra.mxu0 0
        %1563 = vmatprep.subr.bf16.mxu0 0
        %1564 = vmatpush1.bf16.msra.mxu0 0
        %1565 = vmatprep.subr.bf16.mxu0 0
        %1566 = vmatpush1.bf16.msra.mxu0 0
        %1567 = vmatprep.subr.bf16.mxu0 0
        %1568 = vmatpush1.bf16.msra.mxu0 0
        %1569 = vmatprep.subr.bf16.mxu0 0
        %1570 = vmatpush1.bf16.msra.mxu0 0
        %1571 = vmatprep.subr.bf16.mxu0 0
        %1572 = vmatpush1.bf16.msra.mxu0 0
        %1573 = vmatprep.subr.bf16.mxu0 0
        %1574 = vmatpush1.bf16.msra.mxu0 %v1557
        %1575 = vmatprep.subr.bf16.mxu0 0
        %1576 = vmatpush2.bf16.msra.mxu0 0
        %1577 = vmatprep.subr.bf16.mxu0 0
        %1578 = vmatpush2.bf16.msra.mxu0 0
        %1579 = vmatprep.subr.bf16.mxu0 0
        %1580 = vmatpush2.bf16.msra.mxu0 0
        %1581 = vmatprep.subr.bf16.mxu0 0
        %1582 = vmatpush2.bf16.msra.mxu0 0
        %1583 = vmatprep.subr.bf16.mxu0 0
        %1584 = vmatpush2.bf16.msra.mxu0 0
        %1585 = vmatprep.subr.bf16.mxu0 0
        %1586 = vmatpush2.bf16.msra.mxu0 0
        %1587 = vmatprep.subr.bf16.mxu0 0
        %1588 = vmatpush2.bf16.msra.mxu0 0
        %1589 = vmatprep.subr.bf16.mxu0 0
        %1590 = vmatpush2.bf16.msra.mxu0 0
        %1591 = vmatprep.mubr.bf16.mxu0 0
        %1592 = vmatmul.mubr.bf16.gmra.mxu0 %v1554
        %v1593 = vpop.f32.mrf.mxu0
        %v1594 = vadd.f32 0.0, %v1593
        %v1595 = vpop.f32.mrf.mxu0
        %v1596 = vpop.f32.mrf.mxu0
        %v1597 = vpop.f32.mrf.mxu0
        %1598 = vdwg.mxu0
        %1600 = vrot.lane.b32.xlu0 %v1370, 8
        %v1601 = vpop.permute.xlu0 %1600
        %1604 = vrot.lane.b32.xlu0 %v1482, 16
        %v1605 = vpop.permute.xlu0 %1604
        %1608 = vrot.lane.b32.xlu0 %v1594, 24
        %v1609 = vpop.permute.xlu0 %1608
        %v1611 = vsel %vm1146, %v1255, %v1601
        %vm1612 = vcmask 130048
        %v1613 = vsel %vm1612, %v1611, %v1605
        %vm1614 = vcmask 195584
        %v1615 = vsel %vm1614, %v1613, %v1609
        %v1616 = vpack.c.bf16 %v1615, %v1615
        %v1617 = vld [vmem:[%s15] sm:$0xf]
        %v1618 = vld [vmem:[%s15 + $0x4] sm:$0xf]
        %v1619 = vld [vmem:[%s15 + $0x8] sm:$0xf]
        %v1620 = vld [vmem:[%s15 + $0xc] sm:$0xf]
        %v1621 = vld [vmem:[%s16] sm:$0x1]
        %v1623 = vlaneseq
        %v1624 = vshrl.u32 %v1623, 7
        %v1625 = vsub.s32 0, %v1624
        %v1626 = vrot.slane %v1621, %v1625
        %v1632 = vunpack.c.l.b16 %v1617
        %v1633 = vunpack.c.l.b16 %v1618
        %v1634 = vunpack.c.l.b16 %v1619
        %v1635 = vunpack.c.l.b16 %v1620
        %v1636 = vpack.c.b16 %v1633, %v1632
        %v1637 = vpack.c.b16 %v1635, %v1634
        %v1641 = vsel %vm802, %v1616, 0
        %1643 = vmatprep.subr.bf16.mxu0 0
        %1644 = vmatpush1.bf16.msra.mxu0 0
        %1645 = vmatprep.subr.bf16.mxu0 0
        %1646 = vmatpush1.bf16.msra.mxu0 0
        %1647 = vmatprep.subr.bf16.mxu0 0
        %1648 = vmatpush1.bf16.msra.mxu0 0
        %1649 = vmatprep.subr.bf16.mxu0 0
        %1650 = vmatpush1.bf16.msra.mxu0 0
        %1651 = vmatprep.subr.bf16.mxu0 0
        %1652 = vmatpush1.bf16.msra.mxu0 0
        %1653 = vmatprep.subr.bf16.mxu0 0
        %1654 = vmatpush1.bf16.msra.mxu0 0
        %1655 = vmatprep.subr.bf16.mxu0 0
        %1656 = vmatpush1.bf16.msra.mxu0 %v1637
        %1657 = vmatprep.subr.bf16.mxu0 0
        %1658 = vmatpush1.bf16.msra.mxu0 %v1636
        %1659 = vmatprep.subr.bf16.mxu0 0
        %1660 = vmatpush2.bf16.msra.mxu0 0
        %1661 = vmatprep.subr.bf16.mxu0 0
        %1662 = vmatpush2.bf16.msra.mxu0 0
        %1663 = vmatprep.subr.bf16.mxu0 0
        %1664 = vmatpush2.bf16.msra.mxu0 0
        %1665 = vmatprep.subr.bf16.mxu0 0
        %1666 = vmatpush2.bf16.msra.mxu0 0
        %1667 = vmatprep.subr.bf16.mxu0 0
        %1668 = vmatpush2.bf16.msra.mxu0 0
        %1669 = vmatprep.subr.bf16.mxu0 0
        %1670 = vmatpush2.bf16.msra.mxu0 0
        %1671 = vmatprep.subr.bf16.mxu0 0
        %1672 = vmatpush2.bf16.msra.mxu0 0
        %1673 = vmatprep.subr.bf16.mxu0 0
        %1674 = vmatpush2.bf16.msra.mxu0 0
        %1675 = vmatprep.mubr.bf16.mxu0 0
        %1676 = vmatmul.mubr.bf16.gmra.mxu0 %v1641
        %v1677 = vpop.f32.mrf.mxu0
        %v1678 = vadd.f32 %v1626, %v1677
        %v1679 = vpop.f32.mrf.mxu0
        %v1680 = vpop.f32.mrf.mxu0
        %v1681 = vpop.f32.mrf.mxu0
        %1682 = vdwg.mxu0
        %v1683 = vadd.f32 %v796, %v1678
        %v1684 = vld [vmem:[%s17] sm:$0x1]
        %v1685 = vmul.f32 %v1683, %v1683
        %v1686 = vsel %vm802, %v1685, 0.0
        %1687 = vadd.xlane.f32.xlu0 %v1686
        %v1688 = vpop.xlane.xlu0 %1687
        %v1689 = vmul.f32 %v1688, %v806
        %v1690 = vadd.f32 %v1689, 1e-06
        %v1691 = vrsqrt.pop %v1690
        %v1692 = vmul.f32 %v1683, %v1691
        %v1694 = vlaneseq
        %v1695 = vshrl.u32 %v1694, 7
        %v1696 = vsub.s32 0, %v1695
        %v1697 = vrot.slane %v1684, %v1696
        %v1699 = vmul.f32 %v1692, %v1697
        %v1700 = vpack.c.bf16 %v1699, %v1699
        %v1701 = vld [vmem:[%s18] sm:$0xf]
        %v1702 = vld [vmem:[%s18 + $0x4] sm:$0xf]
        %v1703 = vld [vmem:[%s18 + $0x8] sm:$0xf]
        %v1704 = vld [vmem:[%s18 + $0xc] sm:$0xf]
        %v1705 = vld [vmem:[%s19] sm:$0x1]
        %v1707 = vlaneseq
        %v1708 = vshrl.u32 %v1707, 7
        %v1709 = vsub.s32 0, %v1708
        %v1710 = vrot.slane %v1705, %v1709
        %v1716 = vunpack.c.l.b16 %v1701
        %v1717 = vunpack.c.l.b16 %v1702
        %v1718 = vunpack.c.l.b16 %v1703
        %v1719 = vunpack.c.l.b16 %v1704
        %v1720 = vpack.c.b16 %v1717, %v1716
        %v1721 = vpack.c.b16 %v1719, %v1718
        %v1725 = vsel %vm802, %v1700, 0
        %1727 = vmatprep.subr.bf16.mxu0 0
        %1728 = vmatpush1.bf16.msra.mxu0 0
        %1729 = vmatprep.subr.bf16.mxu0 0
        %1730 = vmatpush1.bf16.msra.mxu0 0
        %1731 = vmatprep.subr.bf16.mxu0 0
        %1732 = vmatpush1.bf16.msra.mxu0 0
        %1733 = vmatprep.subr.bf16.mxu0 0
        %1734 = vmatpush1.bf16.msra.mxu0 0
        %1735 = vmatprep.subr.bf16.mxu0 0
        %1736 = vmatpush1.bf16.msra.mxu0 0
        %1737 = vmatprep.subr.bf16.mxu0 0
        %1738 = vmatpush1.bf16.msra.mxu0 0
        %1739 = vmatprep.subr.bf16.mxu0 0
        %1740 = vmatpush1.bf16.msra.mxu0 %v1721
        %1741 = vmatprep.subr.bf16.mxu0 0
        %1742 = vmatpush1.bf16.msra.mxu0 %v1720
        %1743 = vmatprep.subr.bf16.mxu0 0
        %1744 = vmatpush2.bf16.msra.mxu0 0
        %1745 = vmatprep.subr.bf16.mxu0 0
        %1746 = vmatpush2.bf16.msra.mxu0 0
        %1747 = vmatprep.subr.bf16.mxu0 0
        %1748 = vmatpush2.bf16.msra.mxu0 0
        %1749 = vmatprep.subr.bf16.mxu0 0
        %1750 = vmatpush2.bf16.msra.mxu0 0
        %1751 = vmatprep.subr.bf16.mxu0 0
        %1752 = vmatpush2.bf16.msra.mxu0 0
        %1753 = vmatprep.subr.bf16.mxu0 0
        %1754 = vmatpush2.bf16.msra.mxu0 0
        %1755 = vmatprep.subr.bf16.mxu0 0
        %1756 = vmatpush2.bf16.msra.mxu0 0
        %1757 = vmatprep.subr.bf16.mxu0 0
        %1758 = vmatpush2.bf16.msra.mxu0 0
        %1759 = vmatprep.mubr.bf16.mxu0 0
        %1760 = vmatmul.mubr.bf16.gmra.mxu0 %v1725
        %v1761 = vpop.f32.mrf.mxu0
        %v1762 = vadd.f32 %v1710, %v1761
        %v1763 = vpop.f32.mrf.mxu0
        %v1764 = vpop.f32.mrf.mxu0
        %v1765 = vpop.f32.mrf.mxu0
        %1766 = vdwg.mxu0
        %v1767 = vmul.f32 %v1762, %v1762
        %v1768 = vmul.f32 %v1762, %v1767
        %v1769 = vmul.f32 %v1768, 0.044715
        %v1770 = vadd.f32 %v1762, %v1769
        %v1771 = vmul.f32 %v1770, 0.7978846
        %v1772 = vtanh.pop %v1771
        %v1773 = vadd.f32 %v1772, 1.0
        %v1774 = vmul.f32 %v1773, 0.5
        %v1775 = vmul.f32 %v1762, %v1774
        %v1776 = vpack.c.bf16 %v1775, %v1775
        %v1777 = vld [vmem:[%s20] sm:$0xf]
        %v1778 = vld [vmem:[%s20 + $0x4] sm:$0xf]
        %v1779 = vld [vmem:[%s20 + $0x8] sm:$0xf]
        %v1780 = vld [vmem:[%s20 + $0xc] sm:$0xf]
        %v1781 = vld [vmem:[%s20 + $0x10] sm:$0xf]
        %v1782 = vld [vmem:[%s20 + $0x14] sm:$0xf]
        %v1783 = vld [vmem:[%s20 + $0x18] sm:$0xf]
        %v1784 = vld [vmem:[%s20 + $0x1c] sm:$0xf]
        %v1785 = vld [vmem:[%s20 + $0x20] sm:$0xf]
        %v1786 = vld [vmem:[%s20 + $0x24] sm:$0xf]
        %v1787 = vld [vmem:[%s20 + $0x28] sm:$0xf]
        %v1788 = vld [vmem:[%s20 + $0x2c] sm:$0xf]
        %v1789 = vld [vmem:[%s20 + $0x30] sm:$0xf]
        %v1790 = vld [vmem:[%s20 + $0x34] sm:$0xf]
        %v1791 = vld [vmem:[%s20 + $0x38] sm:$0xf]
        %v1792 = vld [vmem:[%s20 + $0x3c] sm:$0xf]
        %v1793 = vld [vmem:[%s21] sm:$0x1]
        %v1795 = vlaneseq
        %v1796 = vshrl.u32 %v1795, 7
        %v1797 = vsub.s32 0, %v1796
        %v1798 = vrot.slane %v1793, %v1797
        %v1816 = vunpack.c.l.b16 %v1777
        %v1817 = vunpack.c.l.b16 %v1778
        %v1818 = vunpack.c.l.b16 %v1779
        %v1819 = vunpack.c.l.b16 %v1780
        %v1820 = vunpack.c.l.b16 %v1781
        %v1821 = vunpack.c.l.b16 %v1782
        %v1822 = vunpack.c.l.b16 %v1783
        %v1823 = vunpack.c.l.b16 %v1784
        %v1824 = vunpack.c.l.b16 %v1785
        %v1825 = vunpack.c.l.b16 %v1786
        %v1826 = vunpack.c.l.b16 %v1787
        %v1827 = vunpack.c.l.b16 %v1788
        %v1828 = vunpack.c.l.b16 %v1789
        %v1829 = vunpack.c.l.b16 %v1790
        %v1830 = vunpack.c.l.b16 %v1791
        %v1831 = vunpack.c.l.b16 %v1792
        %v1832 = vpack.c.b16 %v1817, %v1816
        %v1833 = vpack.c.b16 %v1819, %v1818
        %v1834 = vpack.c.b16 %v1821, %v1820
        %v1835 = vpack.c.b16 %v1823, %v1822
        %v1836 = vpack.c.b16 %v1825, %v1824
        %v1837 = vpack.c.b16 %v1827, %v1826
        %v1838 = vpack.c.b16 %v1829, %v1828
        %v1839 = vpack.c.b16 %v1831, %v1830
        %1848 = vmatprep.subr.bf16.mxu0 0
        %1849 = vmatpush1.bf16.msra.mxu0 %v1839
        %1850 = vmatprep.subr.bf16.mxu0 0
        %1851 = vmatpush1.bf16.msra.mxu0 %v1838
        %1852 = vmatprep.subr.bf16.mxu0 0
        %1853 = vmatpush1.bf16.msra.mxu0 %v1837
        %1854 = vmatprep.subr.bf16.mxu0 0
        %1855 = vmatpush1.bf16.msra.mxu0 %v1836
        %1856 = vmatprep.subr.bf16.mxu0 0
        %1857 = vmatpush1.bf16.msra.mxu0 %v1835
        %1858 = vmatprep.subr.bf16.mxu0 0
        %1859 = vmatpush1.bf16.msra.mxu0 %v1834
        %1860 = vmatprep.subr.bf16.mxu0 0
        %1861 = vmatpush1.bf16.msra.mxu0 %v1833
        %1862 = vmatprep.subr.bf16.mxu0 0
        %1863 = vmatpush1.bf16.msra.mxu0 %v1832
        %1864 = vmatprep.subr.bf16.mxu0 0
        %1865 = vmatpush2.bf16.msra.mxu0 0
        %1866 = vmatprep.subr.bf16.mxu0 0
        %1867 = vmatpush2.bf16.msra.mxu0 0
        %1868 = vmatprep.subr.bf16.mxu0 0
        %1869 = vmatpush2.bf16.msra.mxu0 0
        %1870 = vmatprep.subr.bf16.mxu0 0
        %1871 = vmatpush2.bf16.msra.mxu0 0
        %1872 = vmatprep.subr.bf16.mxu0 0
        %1873 = vmatpush2.bf16.msra.mxu0 0
        %1874 = vmatprep.subr.bf16.mxu0 0
        %1875 = vmatpush2.bf16.msra.mxu0 0
        %1876 = vmatprep.subr.bf16.mxu0 0
        %1877 = vmatpush2.bf16.msra.mxu0 0
        %1878 = vmatprep.subr.bf16.mxu0 0
        %1879 = vmatpush2.bf16.msra.mxu0 0
        %1880 = vmatprep.mubr.bf16.mxu0 0
        %1881 = vmatmul.mubr.bf16.gmra.mxu0 %v1776
        %v1882 = vpop.f32.mrf.mxu0
        %v1883 = vadd.f32 %v1798, %v1882
        %v1884 = vpop.f32.mrf.mxu0
        %v1885 = vpop.f32.mrf.mxu0
        %v1886 = vpop.f32.mrf.mxu0
        %1887 = vdwg.mxu0
        %v1888 = vadd.f32 %v1683, %v1883
        %1889 = vst.msk [vmem:[%s794] sm:$0xff] %vm802, %v1888
        %s1890 = sand.u32 %s524, 1
        %s1891 = scalar_lea.sflag [#allocation4], %s1890
        %s1892 = sand.u32 %s524, 1
        %s1893 = smul.addr %s1892, 8
        %s1894 = scalar_lea.vmem [#allocation14], %s1893
        // Predicated region
        $region137: #{tpu_custom_call.1} parent=107 // pred_check
          %p1895 = pneg %p534
        $region138: #{tpu_custom_call.1} parent=107 // pred_check_branch
          %1897 = sbr.rel (%p1895) target = $region140
        $region139: #{tpu_custom_call.1} parent=107 // pred_region
          %s1899 = ssub.s32 128, 128
          %1900 = vsyncadd %s1891, %s1899
          %s1901 = smul.addr %s44, 128
          %s1902 = scalar_lea.hbm %s22, %s1901
          %s1904 = sshll.u32 %s1894, 4
          %s1905 = int_to_ptr.vmem [resolvable:$true] %s1904
          %1907 = dma.vmem_to_hbm [thread:$0]  %s1905, 128, %s1902, %s1891
        $region140: #{tpu_custom_call.1} parent=107 // pred_fallthru
          _
      $region108: #{tpu_custom_call.1} parent=5 // pred_fallthru
        _
      %p1908 = scmp.le.s32.totalorder 2, %s39
      // Predicated region
      $region141: #{tpu_custom_call.1} parent=5 // pred_check
        %p1909 = pneg %p1908
      $region142: #{tpu_custom_call.1} parent=5 // pred_check_branch
        %1911 = sbr.rel (%p1909) target = $region144
      $region143: #{tpu_custom_call.1} parent=5 // pred_region
        %s1912 = ssub.s32 %s39, 2
        // Predicated region
        $region145: #{tpu_custom_call.1} parent=143 // pred_check
          %p1913 = pneg %p540
        $region146: #{tpu_custom_call.1} parent=143 // pred_check_branch
          %1915 = sbr.rel (%p1913) target = $region148
        $region147: #{tpu_custom_call.1} parent=143 // pred_region
          %s1916 = sand.u32 %s525, 1
          %s1917 = scalar_lea.sflag [#allocation4], %s1916
          %s1918 = sand.u32 %s525, 1
          %s1919 = smul.addr %s1918, 8
          %s1920 = scalar_lea.vmem [#allocation14], %s1919
          %1921 = dma.done %s1917, 128
        $region148: #{tpu_custom_call.1} parent=143 // pred_fallthru
          _
      $region144: #{tpu_custom_call.1} parent=5 // pred_fallthru
        _
    $region6: #{tpu_custom_call.1} parent=1 // loop_footer
      %s43 = sadd.s32 1, %s39
    $region7: #{tpu_custom_call.1} parent=1 // loop_footer_branch
      %38 = sbr.rel target = $region3
    $region8: #{tpu_custom_call.1} parent=1 // loop_exit
      _
    %1922 = vsyncpa [#allocation3], 1
    %s1923 = scalar_lea.sflag [#allocation3], 1
    %1924 = vsyncpa %s1923, 1
    %1925 = vsyncpa [#allocation6], 1
    %s1926 = scalar_lea.sflag [#allocation6], 1
    %1927 = vsyncpa %s1926, 1
    %1928 = vsyncpa [#allocation9], 1
    %1929 = vsyncpa [#allocation12], 1
    %1930 = vsyncpa [#allocation4], 1
    %s1931 = scalar_lea.sflag [#allocation4], 1
    %1932 = vsyncpa %s1931, 1

</llo_original>
